<compile_context>
chip_gen: v6e
topology: v6e:2x2x1
jax: 0.10.0
libtpu: 0.0.40
codegen_flags: <defaults>
</compile_context>

<pallas_src>
import functools

import jax
import jax.numpy as jnp
from jax.experimental import pallas as pl
from jax.experimental.pallas import tpu as pltpu

LN_EPS = 1e-5  # PyTorch nn.LayerNorm default


@functools.lru_cache(maxsize=None)
def _vmem_limit_bytes():
    """Generation-aware VMEM cap: ~56 MiB on v7x (64 MiB phys), 100 MiB on v5e/v6e."""
    try:
        cap = int(pltpu.get_tpu_info().vmem_capacity_bytes)
    except Exception:
        cap = 64 * 1024 * 1024
    return int(min(cap - 8 * 1024 * 1024, 100 * 1024 * 1024))


def _layernorm(x, gamma, beta):
    """LayerNorm in f32 (statistics stay in f32 even when matmuls are bf16)."""
    mu = jnp.mean(x, axis=-1, keepdims=True)
    var = jnp.mean(jnp.square(x - mu), axis=-1, keepdims=True)
    return (x - mu) * jax.lax.rsqrt(var + LN_EPS) * gamma + beta


# ---------------------------------------------------------------------------
# Kernel 1: one full transformer layer (ln1+MHA+res, ln2+FFN+res), one batch el
# ---------------------------------------------------------------------------
def layer_kernel(x_ref, g1_ref, b1_ref, wqkv_ref, wp_ref, bp_ref,
                 g2_ref, b2_ref, w1_ref, bb1_ref, w2_ref, bb2_ref,
                 o_ref, attn_sc_ref, *, n_heads):
    x = x_ref[0]                                   # (T, C) f32 residual stream
    T, C = x.shape
    hs = C // n_heads

    # ---- ln1 + multi-head attention + residual ----------------------------
    h = _layernorm(x, g1_ref[...], b1_ref[...]).astype(jnp.bfloat16)

    # Fused, lane-dense QKV projection: one (T,C) x (C,3C) bf16 matmul.
    # (1/sqrt(hs) is pre-folded into the Q columns of wqkv at init time.)
    qkv = jnp.dot(h, wqkv_ref[...], preferred_element_type=jnp.float32)
    qkv_b = qkv.astype(jnp.bfloat16)                # single bf16 cast of (T,3C)

    row = jax.lax.broadcasted_iota(jnp.int32, (T, T), 0)
    col = jax.lax.broadcasted_iota(jnp.int32, (T, T), 1)
    causal = col <= row

    # Static unroll over heads; per-head temporaries die inside each iteration
    # (the only carried state is the bf16 VMEM scratch of head outputs).
    # TODO(synk): skip fully-masked key blocks (causal tiling) for large T.
    for i in range(n_heads):
        qi = qkv_b[:, i * hs:(i + 1) * hs]
        ki = qkv_b[:, C + i * hs:C + (i + 1) * hs]
        vi = qkv_b[:, 2 * C + i * hs:2 * C + (i + 1) * hs]
        # scores: contract the head dims directly (no materialized k.T)
        s = jax.lax.dot_general(qi, ki, (((1,), (1,)), ((), ())),
                                preferred_element_type=jnp.float32)
        s = jnp.where(causal, s, -jnp.inf)
        m = jnp.max(s, axis=-1, keepdims=True)
        e = jnp.exp(s - m)                          # f32 exp (safe on all gens)
        denom = jnp.sum(e, axis=-1, keepdims=True)
        p = (e * pl.reciprocal(denom, approx=True)).astype(jnp.bfloat16)
        oi = jnp.dot(p, vi, preferred_element_type=jnp.float32)     # (T, hs)
        # concat head outputs in VMEM (bf16) instead of per-head K=hs matmuls
        attn_sc_ref[:, i * hs:(i + 1) * hs] = oi.astype(jnp.bfloat16)

    # Single full-depth (K=C) output projection on the concatenated heads.
    att = jnp.dot(attn_sc_ref[...], wp_ref[...],
                  preferred_element_type=jnp.float32)
    x1 = x + att + bp_ref[...]

    # ---- ln2 + feed-forward + residual -------------------------------------
    h2 = _layernorm(x1, g2_ref[...], b2_ref[...]).astype(jnp.bfloat16)
    z = jnp.dot(h2, w1_ref[...], preferred_element_type=jnp.float32) + bb1_ref[...]
    z = jnp.maximum(z, 0.0).astype(jnp.bfloat16)    # ReLU
    y = jnp.dot(z, w2_ref[...], preferred_element_type=jnp.float32) + bb2_ref[...]
    o_ref[0] = x1 + y


# ---------------------------------------------------------------------------
# Kernel 2: final LayerNorm (hoisted out of lm_head), emits bf16 activations
# ---------------------------------------------------------------------------
def final_ln_kernel(x_ref, g_ref, b_ref, o_ref):
    o_ref[0] = _layernorm(x_ref[0], g_ref[...], b_ref[...]).astype(jnp.bfloat16)


# ---------------------------------------------------------------------------
# Kernel 3: lm_head — pure matmul on bf16 input, tiled over (vocab, rows)
# ---------------------------------------------------------------------------
def lm_head_kernel(h_ref, w_ref, bl_ref, o_ref):
    o_ref[...] = (jnp.dot(h_ref[...], w_ref[...],
                          preferred_element_type=jnp.float32) + bl_ref[...])


# ---------------------------------------------------------------------------
# Wrappers
# ---------------------------------------------------------------------------
def _full_spec(shape):
    nd = len(shape)
    # NOTE: grid-invariant weight blocks are double-buffered by default; on v7x
    # with much larger C, single-buffering them (pipeline_mode=Buffered(1))
    # would halve their VMEM residency.  Negligible at C<=384, so not applied.
    return pl.BlockSpec(shape, lambda b, _nd=nd: (0,) * _nd)


def transformer_layer(x, blk, n_heads):
    B, T, C = x.shape
    weights = (blk["g1"], blk["b1"], blk["wqkv"], blk["wp"], blk["bp"],
               blk["g2"], blk["b2"], blk["w1"], blk["bb1"], blk["w2"],
               blk["bb2"])
    flops = int(24 * B * T * C * C + 4 * B * T * T * C)
    bytes_accessed = int(sum(w.size * w.dtype.itemsize for w in weights)
                         + 2 * B * T * C * 4)
    cost = pl.CostEstimate(flops=flops,
                           transcendentals=int(B * n_heads * T * T),
                           bytes_accessed=bytes_accessed)
    return pl.pallas_call(
        functools.partial(layer_kernel, n_heads=n_heads),
        out_shape=jax.ShapeDtypeStruct((B, T, C), x.dtype),
        grid=(B,),
        in_specs=[pl.BlockSpec((1, T, C), lambda b: (b, 0, 0))]
                 + [_full_spec(w.shape) for w in weights],
        out_specs=pl.BlockSpec((1, T, C), lambda b: (b, 0, 0)),
        scratch_shapes=[pltpu.VMEM((T, C), jnp.bfloat16)],   # concat'd head outs
        compiler_params=pltpu.CompilerParams(
            dimension_semantics=("parallel",),
            vmem_limit_bytes=_vmem_limit_bytes()),
        cost_estimate=cost,
    )(x, *weights)


def final_ln(x, gamma, beta):
    B, T, C = x.shape
    return pl.pallas_call(
        final_ln_kernel,
        out_shape=jax.ShapeDtypeStruct((B, T, C), jnp.bfloat16),
        grid=(B,),
        in_specs=[pl.BlockSpec((1, T, C), lambda b: (b, 0, 0)),
                  pl.BlockSpec(gamma.shape, lambda b: (0, 0)),
                  pl.BlockSpec(beta.shape, lambda b: (0, 0))],
        out_specs=pl.BlockSpec((1, T, C), lambda b: (b, 0, 0)),
        compiler_params=pltpu.CompilerParams(
            dimension_semantics=("parallel",),
            vmem_limit_bytes=_vmem_limit_bytes()),
    )(x, gamma, beta)


def lm_head(h, w, bl, tile_v=2048, tile_rows=1024):
    """h: (B*T, C) bf16 (already LayerNorm'd). Returns (B*T, V) f32 logits."""
    BT, C = h.shape
    V = w.shape[-1]
    if V <= tile_v:
        tn, v_pad = V, V                     # single lane tile, no pad, no slice
    else:
        tn = tile_v                          # lane-dense 2048-wide vocab tiles
        v_pad = pl.cdiv(V, tn) * tn
        if v_pad != V:
            w = jnp.pad(w, ((0, 0), (0, v_pad - V)))
            bl = jnp.pad(bl, ((0, 0), (0, v_pad - V)))
    n_v = v_pad // tn
    tr = BT
    for cand in (tile_rows, 512, 256, 128):  # cap the output row tile
        if BT > cand and BT % cand == 0:
            tr = cand
            break
    n_r = BT // tr
    cost = pl.CostEstimate(
        flops=int(2 * BT * C * v_pad),
        transcendentals=0,
        bytes_accessed=int(BT * C * 2 + C * v_pad * 2 + BT * v_pad * 4))
    out = pl.pallas_call(
        lm_head_kernel,
        out_shape=jax.ShapeDtypeStruct((BT, v_pad), jnp.float32),
        # Vocab axis OUTER, rows INNER: each lm_head weight tile is DMA'd from
        # HBM exactly once (previously re-streamed once per batch element).
        grid=(n_v, n_r),
        in_specs=[pl.BlockSpec((tr, C), lambda v, r: (r, 0)),
                  pl.BlockSpec((C, tn), lambda v, r: (0, v)),
                  pl.BlockSpec((1, tn), lambda v, r: (0, v))],
        out_specs=pl.BlockSpec((tr, tn), lambda v, r: (r, v)),
        compiler_params=pltpu.CompilerParams(
            dimension_semantics=("parallel", "parallel"),
            vmem_limit_bytes=_vmem_limit_bytes()),
        cost_estimate=cost,
    )(h, w, bl)
    if v_pad != V:
        # Downstream consumers could instead keep the padded logits and mask.
        out = out[:, :V]
    return out


# ---------------------------------------------------------------------------
# Parameter init (deterministic, synthetic). Matmul weights stored bf16 as
# [in_features, out_features]; QKV fused as [C, 3C] with head-major columns.
# The attention scale 1/sqrt(hs) is folded into the Q columns of wqkv.
# ---------------------------------------------------------------------------
def init_params(key, vocab_size, block_size, n_embd, n_layers, n_heads):
    ks = iter(jax.random.split(key, 4 + 4 * n_layers))
    hs = n_embd // n_heads

    def w(shape, scale=0.02):
        return scale * jax.random.normal(next(ks), shape, jnp.float32)

    params = {
        "tok_emb": w((vocab_size, n_embd)),
        "pos_emb": w((block_size, n_embd)),
        "gf": jnp.ones((1, n_embd), jnp.float32),
        "bf": jnp.zeros((1, n_embd), jnp.float32),
        "w_lm": w((n_embd, vocab_size)).astype(jnp.bfloat16),
        "b_lm": jnp.zeros((1, vocab_size), jnp.float32),
        "blocks": [],
    }
    for _ in range(n_layers):
        wqkv = w((n_embd, 3 * n_embd))              # [ q-heads | k-heads | v-heads ]
        wqkv = wqkv.at[:, :n_embd].multiply(hs ** -0.5)   # fold attention scale
        params["blocks"].append({
            "g1": jnp.ones((1, n_embd), jnp.float32),
            "b1": jnp.zeros((1, n_embd), jnp.float32),
            "wqkv": wqkv.astype(jnp.bfloat16),
            "wp": w((n_embd, n_embd)).astype(jnp.bfloat16),
            "bp": jnp.zeros((1, n_embd), jnp.float32),
            "g2": jnp.ones((1, n_embd), jnp.float32),
            "b2": jnp.zeros((1, n_embd), jnp.float32),
            "w1": w((n_embd, 4 * n_embd)).astype(jnp.bfloat16),
            "bb1": jnp.zeros((1, 4 * n_embd), jnp.float32),
            "w2": w((4 * n_embd, n_embd)).astype(jnp.bfloat16),
            "bb2": jnp.zeros((1, n_embd), jnp.float32),
        })
    return params


# ---------------------------------------------------------------------------
# Full GPT forward (embedding gather = glue in plain JAX, hot path in Pallas)
# ---------------------------------------------------------------------------
def gpt_forward(params, idx, n_heads):
    B, T = idx.shape
    tok = params["tok_emb"][idx]                    # (B, T, C) gather
    pos = params["pos_emb"][:T]                     # (T, C)
    x = (tok + pos[None]).astype(jnp.float32)       # residual stream in f32
    for blk in params["blocks"]:
        x = transformer_layer(x, blk, n_heads)
    h = final_ln(x, params["gf"], params["bf"])     # (B, T, C) bf16
    C = h.shape[-1]
    logits = lm_head(h.reshape(B * T, C), params["w_lm"], params["b_lm"])
    return logits.reshape(B, T, -1), None           # targets=None -> loss=None


# ---------------------------------------------------------------------------
# Pure-JAX reference with identical bf16-input / f32-accumulate discipline
# (scale is folded into wqkv exactly as in the kernel path)
# ---------------------------------------------------------------------------
def gpt_forward_ref(params, idx, n_heads):
    B, T = idx.shape
    x = (params["tok_emb"][idx] + params["pos_emb"][:T][None]).astype(jnp.float32)
    C = x.shape[-1]
    hs = C // n_heads
    causal = jnp.tril(jnp.ones((T, T), bool))
    for blk in params["blocks"]:
        h = _layernorm(x, blk["g1"], blk["b1"]).astype(jnp.bfloat16)
        qkv = jnp.einsum('btc,cd->btd', h, blk["wqkv"],
                         preferred_element_type=jnp.float32)
        qkv = qkv.astype(jnp.bfloat16)
        outs = []
        for i in range(n_heads):
            qi = qkv[..., i * hs:(i + 1) * hs]
            ki = qkv[..., C + i * hs:C + (i + 1) * hs]
            vi = qkv[..., 2 * C + i * hs:2 * C + (i + 1) * hs]
            s = jnp.einsum('bqd,bkd->bqk', qi, ki,
                           preferred_element_type=jnp.float32)
            s = jnp.where(causal, s, -jnp.inf)
            p = jax.nn.softmax(s, axis=-1).astype(jnp.bfloat16)
            outs.append(jnp.einsum('bqk,bkd->bqd', p, vi,
                                   preferred_element_type=jnp.float32
                                   ).astype(jnp.bfloat16))
        att_in = jnp.concatenate(outs, axis=-1)
        att = jnp.einsum('btc,cd->btd', att_in, blk["wp"],
                         preferred_element_type=jnp.float32)
        x = x + att + blk["bp"]
        h2 = _layernorm(x, blk["g2"], blk["b2"]).astype(jnp.bfloat16)
        z = jnp.einsum('btc,cd->btd', h2, blk["w1"],
                       preferred_element_type=jnp.float32) + blk["bb1"]
        z = jnp.maximum(z, 0.0).astype(jnp.bfloat16)
        y = jnp.einsum('btd,dc->btc', z, blk["w2"],
                       preferred_element_type=jnp.float32) + blk["bb2"]
        x = x + y
    h = _layernorm(x, params["gf"], params["bf"]).astype(jnp.bfloat16)
    return jnp.einsum('btc,cv->btv', h, params["w_lm"],
                      preferred_element_type=jnp.float32) + params["b_lm"]


if __name__ == "__main__":
    # small shapes consistent with the module's forward
    VOCAB, BLOCK_SIZE, N_EMBD, N_LAYERS, N_HEADS = 64, 16, 32, 2, 4
    B, T = 2, 8

    key = jax.random.PRNGKey(0)
    pkey, ikey = jax.random.split(key)
    params = init_params(pkey, VOCAB, BLOCK_SIZE, N_EMBD, N_LAYERS, N_HEADS)
    idx = jax.random.randint(ikey, (B, T), 0, VOCAB, dtype=jnp.int32)

    logits, loss = gpt_forward(params, idx, N_HEADS)
    logits = jax.block_until_ready(logits)
    assert logits.shape == (B, T, VOCAB) and loss is None

    ref = gpt_forward_ref(params, idx, N_HEADS)
    max_err = float(jnp.max(jnp.abs(logits - ref)))
    assert jnp.allclose(logits, ref, atol=2e-2, rtol=2e-2), \
        f"mismatch vs reference (max abs err {max_err})"

    print("KERNEL_OK")
</pallas_src>

<mosaic_0001>
module attributes {stable_mosaic.version = 11 : i64} {
  func.func @layer_kernel(%arg0: i32, %arg1: memref<1x8x32xf32, #tpu.memory_space<vmem>>, %arg2: memref<1x32xf32, #tpu.memory_space<vmem>>, %arg3: memref<1x32xf32, #tpu.memory_space<vmem>>, %arg4: memref<32x96xbf16, #tpu.memory_space<vmem>>, %arg5: memref<32x32xbf16, #tpu.memory_space<vmem>>, %arg6: memref<1x32xf32, #tpu.memory_space<vmem>>, %arg7: memref<1x32xf32, #tpu.memory_space<vmem>>, %arg8: memref<1x32xf32, #tpu.memory_space<vmem>>, %arg9: memref<32x128xbf16, #tpu.memory_space<vmem>>, %arg10: memref<1x128xf32, #tpu.memory_space<vmem>>, %arg11: memref<128x32xbf16, #tpu.memory_space<vmem>>, %arg12: memref<1x32xf32, #tpu.memory_space<vmem>>, %arg13: memref<1x8x32xf32, #tpu.memory_space<vmem>>, %arg14: memref<8x32xbf16, #tpu.memory_space<vmem>>) attributes {dimension_semantics = [#tpu.dimension_semantics<parallel>], iteration_bounds = array<i64: 2>, scalar_prefetch = 0 : i64, scratch_operands = 1 : i64, tpu.core_type = #tpu.core_type<tc>, window_params = [{transform_indices = @transform_0, window_bounds = array<i64: 1, 8, 32>}, {pipeline_mode = #tpu.pipeline_mode<synchronous>, transform_indices = @transform_1, window_bounds = array<i64: 1, 32>}, {pipeline_mode = #tpu.pipeline_mode<synchronous>, transform_indices = @transform_2, window_bounds = array<i64: 1, 32>}, {pipeline_mode = #tpu.pipeline_mode<synchronous>, transform_indices = @transform_3, window_bounds = array<i64: 32, 96>}, {pipeline_mode = #tpu.pipeline_mode<synchronous>, transform_indices = @transform_4, window_bounds = array<i64: 32, 32>}, {pipeline_mode = #tpu.pipeline_mode<synchronous>, transform_indices = @transform_5, window_bounds = array<i64: 1, 32>}, {pipeline_mode = #tpu.pipeline_mode<synchronous>, transform_indices = @transform_6, window_bounds = array<i64: 1, 32>}, {pipeline_mode = #tpu.pipeline_mode<synchronous>, transform_indices = @transform_7, window_bounds = array<i64: 1, 32>}, {pipeline_mode = #tpu.pipeline_mode<synchronous>, transform_indices = @transform_8, window_bounds = array<i64: 32, 128>}, {pipeline_mode = #tpu.pipeline_mode<synchronous>, transform_indices = @transform_9, window_bounds = array<i64: 1, 128>}, {pipeline_mode = #tpu.pipeline_mode<synchronous>, transform_indices = @transform_10, window_bounds = array<i64: 128, 32>}, {pipeline_mode = #tpu.pipeline_mode<synchronous>, transform_indices = @transform_11, window_bounds = array<i64: 1, 32>}, {transform_indices = @transform_12, window_bounds = array<i64: 1, 8, 32>}]} {
    %c0 = arith.constant 0 : index
    %c0_0 = arith.constant 0 : index
    %c0_1 = arith.constant 0 : index
    %0 = vector.load %arg1[%c0, %c0_0, %c0_1] : memref<1x8x32xf32, #tpu.memory_space<vmem>>, vector<1x8x32xf32>
    %1 = vector.shape_cast %0 : vector<1x8x32xf32> to vector<8x32xf32>
    %c0_2 = arith.constant 0 : index
    %c0_3 = arith.constant 0 : index
    %2 = vector.load %arg2[%c0_2, %c0_3] : memref<1x32xf32, #tpu.memory_space<vmem>>, vector<1x32xf32>
    %c0_4 = arith.constant 0 : index
    %c0_5 = arith.constant 0 : index
    %3 = vector.load %arg3[%c0_4, %c0_5] : memref<1x32xf32, #tpu.memory_space<vmem>>, vector<1x32xf32>
    %cst = arith.constant dense<0.000000e+00> : vector<8xf32>
    %4 = vector.multi_reduction <add>, %1, %cst [1] : vector<8x32xf32> to vector<8xf32>
    %5 = vector.shape_cast %4 : vector<8xf32> to vector<8x1xf32>
    %cst_6 = arith.constant 3.200000e+01 : f32
    %6 = vector.broadcast %cst_6 : f32 to vector<8x1xf32>
    %7 = arith.divf %5, %6 : vector<8x1xf32>
    %8 = vector.broadcast %7 : vector<8x1xf32> to vector<8x32xf32>
    %9 = arith.subf %1, %8 : vector<8x32xf32>
    %10 = arith.mulf %9, %9 : vector<8x32xf32>
    %cst_7 = arith.constant dense<0.000000e+00> : vector<8xf32>
    %11 = vector.multi_reduction <add>, %10, %cst_7 [1] : vector<8x32xf32> to vector<8xf32>
    %12 = vector.shape_cast %11 : vector<8xf32> to vector<8x1xf32>
    %cst_8 = arith.constant 3.200000e+01 : f32
    %13 = vector.broadcast %cst_8 : f32 to vector<8x1xf32>
    %14 = arith.divf %12, %13 : vector<8x1xf32>
    %15 = vector.broadcast %7 : vector<8x1xf32> to vector<8x32xf32>
    %16 = arith.subf %1, %15 : vector<8x32xf32>
    %cst_9 = arith.constant 9.99999974E-6 : f32
    %17 = vector.broadcast %cst_9 : f32 to vector<8x1xf32>
    %18 = arith.addf %14, %17 : vector<8x1xf32>
    %19 = math.rsqrt %18 : vector<8x1xf32>
    %20 = vector.broadcast %19 : vector<8x1xf32> to vector<8x32xf32>
    %21 = arith.mulf %16, %20 : vector<8x32xf32>
    %22 = vector.broadcast %2 : vector<1x32xf32> to vector<8x32xf32>
    %23 = arith.mulf %21, %22 : vector<8x32xf32>
    %24 = vector.broadcast %3 : vector<1x32xf32> to vector<8x32xf32>
    %25 = arith.addf %23, %24 : vector<8x32xf32>
    %26 = arith.truncf %25 : vector<8x32xf32> to vector<8x32xbf16>
    %c0_10 = arith.constant 0 : index
    %c0_11 = arith.constant 0 : index
    %27 = vector.load %arg4[%c0_10, %c0_11] : memref<32x96xbf16, #tpu.memory_space<vmem>>, vector<32x96xbf16>
    %cst_12 = arith.constant dense<0.000000e+00> : vector<8x96xf32>
    %28 = tpu.matmul %26, %27, %cst_12 {dimension_numbers = #tpu.dot_dimension_numbers<[1], [0], [0], [1], [0, 0, 1, 1], [], []>} : vector<8x32xbf16>, vector<32x96xbf16>, vector<8x96xf32> -> vector<8x96xf32>
    %29 = arith.truncf %28 : vector<8x96xf32> to vector<8x96xbf16>
    %30 = tpu.iota {dimensions = array<i32: 0>} : vector<8x8xi32>
    %31 = tpu.iota {dimensions = array<i32: 1>} : vector<8x8xi32>
    %32 = arith.cmpi sle, %31, %30 : vector<8x8xi32>
    %33 = vector.extract_strided_slice %29 {offsets = [0, 0], sizes = [8, 8], strides = [1, 1]} : vector<8x96xbf16> to vector<8x8xbf16>
    %34 = vector.extract_strided_slice %29 {offsets = [0, 32], sizes = [8, 8], strides = [1, 1]} : vector<8x96xbf16> to vector<8x8xbf16>
    %35 = vector.extract_strided_slice %29 {offsets = [0, 64], sizes = [8, 8], strides = [1, 1]} : vector<8x96xbf16> to vector<8x8xbf16>
    %cst_13 = arith.constant dense<0.000000e+00> : vector<8x8xf32>
    %36 = tpu.matmul %33, %34, %cst_13 {dimension_numbers = #tpu.dot_dimension_numbers<[1], [1], [0], [0], [0, 0, 1, 0], [], []>} : vector<8x8xbf16>, vector<8x8xbf16>, vector<8x8xf32> -> vector<8x8xf32>
    %cst_14 = arith.constant 0xFF800000 : f32
    %37 = vector.broadcast %cst_14 : f32 to vector<8x8xf32>
    %38 = arith.select %32, %36, %37 : vector<8x8xi1>, vector<8x8xf32>
    %cst_15 = arith.constant dense<0xFF800000> : vector<8xf32>
    %39 = vector.multi_reduction <maximumf>, %38, %cst_15 [1] : vector<8x8xf32> to vector<8xf32>
    %40 = vector.shape_cast %39 : vector<8xf32> to vector<8x1xf32>
    %41 = vector.broadcast %40 : vector<8x1xf32> to vector<8x8xf32>
    %42 = arith.subf %38, %41 : vector<8x8xf32>
    %43 = math.exp %42 : vector<8x8xf32>
    %cst_16 = arith.constant dense<0.000000e+00> : vector<8xf32>
    %44 = vector.multi_reduction <add>, %43, %cst_16 [1] : vector<8x8xf32> to vector<8xf32>
    %45 = vector.shape_cast %44 : vector<8xf32> to vector<8x1xf32>
    %46 = tpu.reciprocal %45 {approx = true} : vector<8x1xf32> -> vector<8x1xf32>
    %47 = vector.broadcast %46 : vector<8x1xf32> to vector<8x8xf32>
    %48 = arith.mulf %43, %47 : vector<8x8xf32>
    %49 = arith.truncf %48 : vector<8x8xf32> to vector<8x8xbf16>
    %cst_17 = arith.constant dense<0.000000e+00> : vector<8x8xf32>
    %50 = tpu.matmul %49, %35, %cst_17 {dimension_numbers = #tpu.dot_dimension_numbers<[1], [0], [0], [1], [0, 0, 1, 1], [], []>} : vector<8x8xbf16>, vector<8x8xbf16>, vector<8x8xf32> -> vector<8x8xf32>
    %51 = arith.truncf %50 : vector<8x8xf32> to vector<8x8xbf16>
    %c0_18 = arith.constant 0 : index
    %c0_19 = arith.constant 0 : index
    %52 = vector.load %arg14[%c0_18, %c0_19] : memref<8x32xbf16, #tpu.memory_space<vmem>>, vector<8x8xbf16>
    tpu.vector_store %arg14[%c0_18, %c0_19], %51 {strides = array<i32>} : memref<8x32xbf16, #tpu.memory_space<vmem>>, vector<8x8xbf16>,
    %53 = vector.extract_strided_slice %29 {offsets = [0, 8], sizes = [8, 8], strides = [1, 1]} : vector<8x96xbf16> to vector<8x8xbf16>
    %54 = vector.extract_strided_slice %29 {offsets = [0, 40], sizes = [8, 8], strides = [1, 1]} : vector<8x96xbf16> to vector<8x8xbf16>
    %55 = vector.extract_strided_slice %29 {offsets = [0, 72], sizes = [8, 8], strides = [1, 1]} : vector<8x96xbf16> to vector<8x8xbf16>
    %cst_20 = arith.constant dense<0.000000e+00> : vector<8x8xf32>
    %56 = tpu.matmul %53, %54, %cst_20 {dimension_numbers = #tpu.dot_dimension_numbers<[1], [1], [0], [0], [0, 0, 1, 0], [], []>} : vector<8x8xbf16>, vector<8x8xbf16>, vector<8x8xf32> -> vector<8x8xf32>
    %cst_21 = arith.constant 0xFF800000 : f32
    %57 = vector.broadcast %cst_21 : f32 to vector<8x8xf32>
    %58 = arith.select %32, %56, %57 : vector<8x8xi1>, vector<8x8xf32>
    %cst_22 = arith.constant dense<0xFF800000> : vector<8xf32>
    %59 = vector.multi_reduction <maximumf>, %58, %cst_22 [1] : vector<8x8xf32> to vector<8xf32>
    %60 = vector.shape_cast %59 : vector<8xf32> to vector<8x1xf32>
    %61 = vector.broadcast %60 : vector<8x1xf32> to vector<8x8xf32>
    %62 = arith.subf %58, %61 : vector<8x8xf32>
    %63 = math.exp %62 : vector<8x8xf32>
    %cst_23 = arith.constant dense<0.000000e+00> : vector<8xf32>
    %64 = vector.multi_reduction <add>, %63, %cst_23 [1] : vector<8x8xf32> to vector<8xf32>
    %65 = vector.shape_cast %64 : vector<8xf32> to vector<8x1xf32>
    %66 = tpu.reciprocal %65 {approx = true} : vector<8x1xf32> -> vector<8x1xf32>
    %67 = vector.broadcast %66 : vector<8x1xf32> to vector<8x8xf32>
    %68 = arith.mulf %63, %67 : vector<8x8xf32>
    %69 = arith.truncf %68 : vector<8x8xf32> to vector<8x8xbf16>
    %cst_24 = arith.constant dense<0.000000e+00> : vector<8x8xf32>
    %70 = tpu.matmul %69, %55, %cst_24 {dimension_numbers = #tpu.dot_dimension_numbers<[1], [0], [0], [1], [0, 0, 1, 1], [], []>} : vector<8x8xbf16>, vector<8x8xbf16>, vector<8x8xf32> -> vector<8x8xf32>
    %71 = arith.truncf %70 : vector<8x8xf32> to vector<8x8xbf16>
    %c0_25 = arith.constant 0 : index
    %c8 = arith.constant 8 : index
    %72 = vector.load %arg14[%c0_25, %c8] : memref<8x32xbf16, #tpu.memory_space<vmem>>, vector<8x8xbf16>
    tpu.vector_store %arg14[%c0_25, %c8], %71 {strides = array<i32>} : memref<8x32xbf16, #tpu.memory_space<vmem>>, vector<8x8xbf16>,
    %73 = vector.extract_strided_slice %29 {offsets = [0, 16], sizes = [8, 8], strides = [1, 1]} : vector<8x96xbf16> to vector<8x8xbf16>
    %74 = vector.extract_strided_slice %29 {offsets = [0, 48], sizes = [8, 8], strides = [1, 1]} : vector<8x96xbf16> to vector<8x8xbf16>
    %75 = vector.extract_strided_slice %29 {offsets = [0, 80], sizes = [8, 8], strides = [1, 1]} : vector<8x96xbf16> to vector<8x8xbf16>
    %cst_26 = arith.constant dense<0.000000e+00> : vector<8x8xf32>
    %76 = tpu.matmul %73, %74, %cst_26 {dimension_numbers = #tpu.dot_dimension_numbers<[1], [1], [0], [0], [0, 0, 1, 0], [], []>} : vector<8x8xbf16>, vector<8x8xbf16>, vector<8x8xf32> -> vector<8x8xf32>
    %cst_27 = arith.constant 0xFF800000 : f32
    %77 = vector.broadcast %cst_27 : f32 to vector<8x8xf32>
    %78 = arith.select %32, %76, %77 : vector<8x8xi1>, vector<8x8xf32>
    %cst_28 = arith.constant dense<0xFF800000> : vector<8xf32>
    %79 = vector.multi_reduction <maximumf>, %78, %cst_28 [1] : vector<8x8xf32> to vector<8xf32>
    %80 = vector.shape_cast %79 : vector<8xf32> to vector<8x1xf32>
    %81 = vector.broadcast %80 : vector<8x1xf32> to vector<8x8xf32>
    %82 = arith.subf %78, %81 : vector<8x8xf32>
    %83 = math.exp %82 : vector<8x8xf32>
    %cst_29 = arith.constant dense<0.000000e+00> : vector<8xf32>
    %84 = vector.multi_reduction <add>, %83, %cst_29 [1] : vector<8x8xf32> to vector<8xf32>
    %85 = vector.shape_cast %84 : vector<8xf32> to vector<8x1xf32>
    %86 = tpu.reciprocal %85 {approx = true} : vector<8x1xf32> -> vector<8x1xf32>
    %87 = vector.broadcast %86 : vector<8x1xf32> to vector<8x8xf32>
    %88 = arith.mulf %83, %87 : vector<8x8xf32>
    %89 = arith.truncf %88 : vector<8x8xf32> to vector<8x8xbf16>
    %cst_30 = arith.constant dense<0.000000e+00> : vector<8x8xf32>
    %90 = tpu.matmul %89, %75, %cst_30 {dimension_numbers = #tpu.dot_dimension_numbers<[1], [0], [0], [1], [0, 0, 1, 1], [], []>} : vector<8x8xbf16>, vector<8x8xbf16>, vector<8x8xf32> -> vector<8x8xf32>
    %91 = arith.truncf %90 : vector<8x8xf32> to vector<8x8xbf16>
    %c0_31 = arith.constant 0 : index
    %c16 = arith.constant 16 : index
    %92 = vector.load %arg14[%c0_31, %c16] : memref<8x32xbf16, #tpu.memory_space<vmem>>, vector<8x8xbf16>
    tpu.vector_store %arg14[%c0_31, %c16], %91 {strides = array<i32>} : memref<8x32xbf16, #tpu.memory_space<vmem>>, vector<8x8xbf16>,
    %93 = vector.extract_strided_slice %29 {offsets = [0, 24], sizes = [8, 8], strides = [1, 1]} : vector<8x96xbf16> to vector<8x8xbf16>
    %94 = vector.extract_strided_slice %29 {offsets = [0, 56], sizes = [8, 8], strides = [1, 1]} : vector<8x96xbf16> to vector<8x8xbf16>
    %95 = vector.extract_strided_slice %29 {offsets = [0, 88], sizes = [8, 8], strides = [1, 1]} : vector<8x96xbf16> to vector<8x8xbf16>
    %cst_32 = arith.constant dense<0.000000e+00> : vector<8x8xf32>
    %96 = tpu.matmul %93, %94, %cst_32 {dimension_numbers = #tpu.dot_dimension_numbers<[1], [1], [0], [0], [0, 0, 1, 0], [], []>} : vector<8x8xbf16>, vector<8x8xbf16>, vector<8x8xf32> -> vector<8x8xf32>
    %cst_33 = arith.constant 0xFF800000 : f32
    %97 = vector.broadcast %cst_33 : f32 to vector<8x8xf32>
    %98 = arith.select %32, %96, %97 : vector<8x8xi1>, vector<8x8xf32>
    %cst_34 = arith.constant dense<0xFF800000> : vector<8xf32>
    %99 = vector.multi_reduction <maximumf>, %98, %cst_34 [1] : vector<8x8xf32> to vector<8xf32>
    %100 = vector.shape_cast %99 : vector<8xf32> to vector<8x1xf32>
    %101 = vector.broadcast %100 : vector<8x1xf32> to vector<8x8xf32>
    %102 = arith.subf %98, %101 : vector<8x8xf32>
    %103 = math.exp %102 : vector<8x8xf32>
    %cst_35 = arith.constant dense<0.000000e+00> : vector<8xf32>
    %104 = vector.multi_reduction <add>, %103, %cst_35 [1] : vector<8x8xf32> to vector<8xf32>
    %105 = vector.shape_cast %104 : vector<8xf32> to vector<8x1xf32>
    %106 = tpu.reciprocal %105 {approx = true} : vector<8x1xf32> -> vector<8x1xf32>
    %107 = vector.broadcast %106 : vector<8x1xf32> to vector<8x8xf32>
    %108 = arith.mulf %103, %107 : vector<8x8xf32>
    %109 = arith.truncf %108 : vector<8x8xf32> to vector<8x8xbf16>
    %cst_36 = arith.constant dense<0.000000e+00> : vector<8x8xf32>
    %110 = tpu.matmul %109, %95, %cst_36 {dimension_numbers = #tpu.dot_dimension_numbers<[1], [0], [0], [1], [0, 0, 1, 1], [], []>} : vector<8x8xbf16>, vector<8x8xbf16>, vector<8x8xf32> -> vector<8x8xf32>
    %111 = arith.truncf %110 : vector<8x8xf32> to vector<8x8xbf16>
    %c0_37 = arith.constant 0 : index
    %c24 = arith.constant 24 : index
    %112 = vector.load %arg14[%c0_37, %c24] : memref<8x32xbf16, #tpu.memory_space<vmem>>, vector<8x8xbf16>
    tpu.vector_store %arg14[%c0_37, %c24], %111 {strides = array<i32>} : memref<8x32xbf16, #tpu.memory_space<vmem>>, vector<8x8xbf16>,
    %c0_38 = arith.constant 0 : index
    %c0_39 = arith.constant 0 : index
    %113 = vector.load %arg14[%c0_38, %c0_39] : memref<8x32xbf16, #tpu.memory_space<vmem>>, vector<8x32xbf16>
    %c0_40 = arith.constant 0 : index
    %c0_41 = arith.constant 0 : index
    %114 = vector.load %arg5[%c0_40, %c0_41] : memref<32x32xbf16, #tpu.memory_space<vmem>>, vector<32x32xbf16>
    %cst_42 = arith.constant dense<0.000000e+00> : vector<8x32xf32>
    %115 = tpu.matmul %113, %114, %cst_42 {dimension_numbers = #tpu.dot_dimension_numbers<[1], [0], [0], [1], [0, 0, 1, 1], [], []>} : vector<8x32xbf16>, vector<32x32xbf16>, vector<8x32xf32> -> vector<8x32xf32>
    %116 = arith.addf %1, %115 : vector<8x32xf32>
    %c0_43 = arith.constant 0 : index
    %c0_44 = arith.constant 0 : index
    %117 = vector.load %arg6[%c0_43, %c0_44] : memref<1x32xf32, #tpu.memory_space<vmem>>, vector<1x32xf32>
    %118 = vector.broadcast %117 : vector<1x32xf32> to vector<8x32xf32>
    %119 = arith.addf %116, %118 : vector<8x32xf32>
    %c0_45 = arith.constant 0 : index
    %c0_46 = arith.constant 0 : index
    %120 = vector.load %arg7[%c0_45, %c0_46] : memref<1x32xf32, #tpu.memory_space<vmem>>, vector<1x32xf32>
    %c0_47 = arith.constant 0 : index
    %c0_48 = arith.constant 0 : index
    %121 = vector.load %arg8[%c0_47, %c0_48] : memref<1x32xf32, #tpu.memory_space<vmem>>, vector<1x32xf32>
    %cst_49 = arith.constant dense<0.000000e+00> : vector<8xf32>
    %122 = vector.multi_reduction <add>, %119, %cst_49 [1] : vector<8x32xf32> to vector<8xf32>
    %123 = vector.shape_cast %122 : vector<8xf32> to vector<8x1xf32>
    %cst_50 = arith.constant 3.200000e+01 : f32
    %124 = vector.broadcast %cst_50 : f32 to vector<8x1xf32>
    %125 = arith.divf %123, %124 : vector<8x1xf32>
    %126 = vector.broadcast %125 : vector<8x1xf32> to vector<8x32xf32>
    %127 = arith.subf %119, %126 : vector<8x32xf32>
    %128 = arith.mulf %127, %127 : vector<8x32xf32>
    %cst_51 = arith.constant dense<0.000000e+00> : vector<8xf32>
    %129 = vector.multi_reduction <add>, %128, %cst_51 [1] : vector<8x32xf32> to vector<8xf32>
    %130 = vector.shape_cast %129 : vector<8xf32> to vector<8x1xf32>
    %cst_52 = arith.constant 3.200000e+01 : f32
    %131 = vector.broadcast %cst_52 : f32 to vector<8x1xf32>
    %132 = arith.divf %130, %131 : vector<8x1xf32>
    %133 = vector.broadcast %125 : vector<8x1xf32> to vector<8x32xf32>
    %134 = arith.subf %119, %133 : vector<8x32xf32>
    %cst_53 = arith.constant 9.99999974E-6 : f32
    %135 = vector.broadcast %cst_53 : f32 to vector<8x1xf32>
    %136 = arith.addf %132, %135 : vector<8x1xf32>
    %137 = math.rsqrt %136 : vector<8x1xf32>
    %138 = vector.broadcast %137 : vector<8x1xf32> to vector<8x32xf32>
    %139 = arith.mulf %134, %138 : vector<8x32xf32>
    %140 = vector.broadcast %120 : vector<1x32xf32> to vector<8x32xf32>
    %141 = arith.mulf %139, %140 : vector<8x32xf32>
    %142 = vector.broadcast %121 : vector<1x32xf32> to vector<8x32xf32>
    %143 = arith.addf %141, %142 : vector<8x32xf32>
    %144 = arith.truncf %143 : vector<8x32xf32> to vector<8x32xbf16>
    %c0_54 = arith.constant 0 : index
    %c0_55 = arith.constant 0 : index
    %145 = vector.load %arg9[%c0_54, %c0_55] : memref<32x128xbf16, #tpu.memory_space<vmem>>, vector<32x128xbf16>
    %cst_56 = arith.constant dense<0.000000e+00> : vector<8x128xf32>
    %146 = tpu.matmul %144, %145, %cst_56 {dimension_numbers = #tpu.dot_dimension_numbers<[1], [0], [0], [1], [0, 0, 1, 1], [], []>} : vector<8x32xbf16>, vector<32x128xbf16>, vector<8x128xf32> -> vector<8x128xf32>
    %c0_57 = arith.constant 0 : index
    %c0_58 = arith.constant 0 : index
    %147 = vector.load %arg10[%c0_57, %c0_58] : memref<1x128xf32, #tpu.memory_space<vmem>>, vector<1x128xf32>
    %148 = vector.broadcast %147 : vector<1x128xf32> to vector<8x128xf32>
    %149 = arith.addf %146, %148 : vector<8x128xf32>
    %cst_59 = arith.constant 0.000000e+00 : f32
    %150 = vector.broadcast %cst_59 : f32 to vector<8x128xf32>
    %151 = arith.maximumf %149, %150 : vector<8x128xf32>
    %152 = arith.truncf %151 : vector<8x128xf32> to vector<8x128xbf16>
    %c0_60 = arith.constant 0 : index
    %c0_61 = arith.constant 0 : index
    %153 = vector.load %arg11[%c0_60, %c0_61] : memref<128x32xbf16, #tpu.memory_space<vmem>>, vector<128x32xbf16>
    %cst_62 = arith.constant dense<0.000000e+00> : vector<8x32xf32>
    %154 = tpu.matmul %152, %153, %cst_62 {dimension_numbers = #tpu.dot_dimension_numbers<[1], [0], [0], [1], [0, 0, 1, 1], [], []>} : vector<8x128xbf16>, vector<128x32xbf16>, vector<8x32xf32> -> vector<8x32xf32>
    %c0_63 = arith.constant 0 : index
    %c0_64 = arith.constant 0 : index
    %155 = vector.load %arg12[%c0_63, %c0_64] : memref<1x32xf32, #tpu.memory_space<vmem>>, vector<1x32xf32>
    %156 = vector.broadcast %155 : vector<1x32xf32> to vector<8x32xf32>
    %157 = arith.addf %154, %156 : vector<8x32xf32>
    %158 = arith.addf %119, %157 : vector<8x32xf32>
    %c0_65 = arith.constant 0 : index
    %c0_66 = arith.constant 0 : index
    %c0_67 = arith.constant 0 : index
    %159 = vector.load %arg13[%c0_65, %c0_66, %c0_67] : memref<1x8x32xf32, #tpu.memory_space<vmem>>, vector<1x8x32xf32>
    %160 = vector.shape_cast %159 : vector<1x8x32xf32> to vector<8x32xf32>
    %161 = vector.shape_cast %158 : vector<8x32xf32> to vector<1x8x32xf32>
    tpu.vector_store %arg13[%c0_65, %c0_66, %c0_67], %161 {strides = array<i32>} : memref<1x8x32xf32, #tpu.memory_space<vmem>>, vector<1x8x32xf32>,
    return
  }
  func.func @transform_0(%arg0: i32) -> (i32, i32, i32) {
    %c0_i32 = arith.constant 0 : i32
    %c0_i32_0 = arith.constant 0 : i32
    %c0_i32_1 = arith.constant 0 : i32
    return %arg0, %c0_i32, %c0_i32_0 : i32, i32, i32
  }
  func.func @transform_1(%arg0: i32) -> (i32, i32) {
    %c0_i32 = arith.constant 0 : i32
    %c0_i32_0 = arith.constant 0 : i32
    %c0_i32_1 = arith.constant 0 : i32
    return %c0_i32, %c0_i32_0 : i32, i32
  }
  func.func @transform_2(%arg0: i32) -> (i32, i32) {
    %c0_i32 = arith.constant 0 : i32
    %c0_i32_0 = arith.constant 0 : i32
    %c0_i32_1 = arith.constant 0 : i32
    return %c0_i32, %c0_i32_0 : i32, i32
  }
  func.func @transform_3(%arg0: i32) -> (i32, i32) {
    %c0_i32 = arith.constant 0 : i32
    %c0_i32_0 = arith.constant 0 : i32
    %c0_i32_1 = arith.constant 0 : i32
    return %c0_i32, %c0_i32_0 : i32, i32
  }
  func.func @transform_4(%arg0: i32) -> (i32, i32) {
    %c0_i32 = arith.constant 0 : i32
    %c0_i32_0 = arith.constant 0 : i32
    %c0_i32_1 = arith.constant 0 : i32
    return %c0_i32, %c0_i32_0 : i32, i32
  }
  func.func @transform_5(%arg0: i32) -> (i32, i32) {
    %c0_i32 = arith.constant 0 : i32
    %c0_i32_0 = arith.constant 0 : i32
    %c0_i32_1 = arith.constant 0 : i32
    return %c0_i32, %c0_i32_0 : i32, i32
  }
  func.func @transform_6(%arg0: i32) -> (i32, i32) {
    %c0_i32 = arith.constant 0 : i32
    %c0_i32_0 = arith.constant 0 : i32
    %c0_i32_1 = arith.constant 0 : i32
    return %c0_i32, %c0_i32_0 : i32, i32
  }
  func.func @transform_7(%arg0: i32) -> (i32, i32) {
    %c0_i32 = arith.constant 0 : i32
    %c0_i32_0 = arith.constant 0 : i32
    %c0_i32_1 = arith.constant 0 : i32
    return %c0_i32, %c0_i32_0 : i32, i32
  }
  func.func @transform_8(%arg0: i32) -> (i32, i32) {
    %c0_i32 = arith.constant 0 : i32
    %c0_i32_0 = arith.constant 0 : i32
    %c0_i32_1 = arith.constant 0 : i32
    return %c0_i32, %c0_i32_0 : i32, i32
  }
  func.func @transform_9(%arg0: i32) -> (i32, i32) {
    %c0_i32 = arith.constant 0 : i32
    %c0_i32_0 = arith.constant 0 : i32
    %c0_i32_1 = arith.constant 0 : i32
    return %c0_i32, %c0_i32_0 : i32, i32
  }
  func.func @transform_10(%arg0: i32) -> (i32, i32) {
    %c0_i32 = arith.constant 0 : i32
    %c0_i32_0 = arith.constant 0 : i32
    %c0_i32_1 = arith.constant 0 : i32
    return %c0_i32, %c0_i32_0 : i32, i32
  }
  func.func @transform_11(%arg0: i32) -> (i32, i32) {
    %c0_i32 = arith.constant 0 : i32
    %c0_i32_0 = arith.constant 0 : i32
    %c0_i32_1 = arith.constant 0 : i32
    return %c0_i32, %c0_i32_0 : i32, i32
  }
  func.func @transform_12(%arg0: i32) -> (i32, i32, i32) {
    %c0_i32 = arith.constant 0 : i32
    %c0_i32_0 = arith.constant 0 : i32
    %c0_i32_1 = arith.constant 0 : i32
    return %arg0, %c0_i32, %c0_i32_0 : i32, i32, i32
  }
}

</mosaic_0001>

<llo_original>
// kernel: tpu_custom_call.1
$region0: #{tpu_custom_call.1}
  #allocation0 [shape = 'u32[]', space=smem, size = 0x4, offset = 0x4, fixed_abs, tag = 'smem constant byte address 0x4 - core index']
  #allocation1 [shape = 'u32[144,128]{1,0:T(1,128)}', space=vmem, size = 0x12000, scoped, tag = 'internal scratch']
  #allocation2 [shape = 'bf16[8,32]{1,0:T(8,128)(2,1)}', space=vmem, size = 0x800, scoped, tag = 'scratch operand']
  %s0 = inlined_call_operand.vmem [shape: f32[2,8,32], index: 0, kind: input, shape index: {}]
  %s1 = inlined_call_operand.vmem [shape: f32[1,32], index: 1, kind: input, shape index: {}]
  %s2 = inlined_call_operand.vmem [shape: f32[1,32], index: 2, kind: input, shape index: {}]
  %s3 = inlined_call_operand.vmem [shape: bf16[32,96], index: 3, kind: input, shape index: {}]
  %s4 = inlined_call_operand.vmem [shape: bf16[32,32], index: 4, kind: input, shape index: {}]
  %s5 = inlined_call_operand.vmem [shape: f32[1,32], index: 5, kind: input, shape index: {}]
  %s6 = inlined_call_operand.vmem [shape: f32[1,32], index: 6, kind: input, shape index: {}]
  %s7 = inlined_call_operand.vmem [shape: f32[1,32], index: 7, kind: input, shape index: {}]
  %s8 = inlined_call_operand.vmem [shape: bf16[32,128], index: 8, kind: input, shape index: {}]
  %s9 = inlined_call_operand.vmem [shape: f32[1,128], index: 9, kind: input, shape index: {}]
  %s10 = inlined_call_operand.vmem [shape: bf16[128,32], index: 10, kind: input, shape index: {}]
  %s11 = inlined_call_operand.vmem [shape: f32[1,32], index: 11, kind: input, shape index: {}]
  %s12 = inlined_call_operand.hbm [shape: f32[2,8,32], index: 12, kind: output, shape index: {}]
  %s13 = sld [smem:[#allocation0]]
  $region81: #{tpu_custom_call.1} parent=0
    _
  %s15 = ssub.s32 1, %s13
  %s16 = scalar_select 0, %s15, %s13
  $region1: #{tpu_custom_call.1} parent=0
    #allocation3 [shape = 'u8[8192]{0}', space=vmem, size = 0x2000, scoped, tag = 'output window, operand 0']
    #allocation4 [shape = 's32[2]{0}', space=sflag, size = 0x8, scoped, tag = 'scoped memory for tpu_custom_call.1']
    %17 = vsyncpa [#allocation4], 0
    %s18 = scalar_lea.sflag [#allocation4], 1
    %19 = vsyncpa %s18, 0
    loop: start=0, step=1, limit=4
    $region2: #{tpu_custom_call.1} parent=1 // loop_pre_header
      _
    $region3: #{tpu_custom_call.1} parent=1 // loop_header
      %s21 = sphi 0, %s25
      %p22 = scmp.ge.s32.totalorder %s21, 4
      %s31 = sphi 0, %s33
      %s34 = sphi 0, %s31
      %s35 = sphi 0, %s34
      %s51 = sphi 0, %s35
      %s55 = sphi 0, %s55
      %s57 = sphi 0, %s55
      %s58 = sphi 0, %s57
      %s72 = sphi 0, %s58
      %s76 = sphi 0, %s76
      %s78 = sphi 0, %s76
      %s79 = sphi 0, %s78
      %s93 = sphi 0, %s79
      %s97 = sphi 0, %s97
      %s99 = sphi 0, %s97
      %s100 = sphi 0, %s99
      %s114 = sphi 0, %s100
      %s118 = sphi 0, %s118
      %s120 = sphi 0, %s118
      %s121 = sphi 0, %s120
      %s135 = sphi 0, %s121
      %s139 = sphi 0, %s139
      %s141 = sphi 0, %s139
      %s142 = sphi 0, %s141
      %s156 = sphi 0, %s142
      %s160 = sphi 0, %s160
      %s162 = sphi 0, %s160
      %s163 = sphi 0, %s162
      %s177 = sphi 0, %s163
      %s181 = sphi 0, %s181
      %s183 = sphi 0, %s181
      %s184 = sphi 0, %s183
      %s198 = sphi 0, %s184
      %s202 = sphi 0, %s202
      %s204 = sphi 0, %s202
      %s205 = sphi 0, %s204
      %s219 = sphi 0, %s205
      %s223 = sphi 0, %s223
      %s225 = sphi 0, %s223
      %s226 = sphi 0, %s225
      %s240 = sphi 0, %s226
      %s244 = sphi 0, %s244
      %s246 = sphi 0, %s244
      %s247 = sphi 0, %s246
      %s261 = sphi 0, %s247
      %s265 = sphi 0, %s265
      %s267 = sphi 0, %s265
      %s268 = sphi 0, %s267
      %s282 = sphi 0, %s268
      %s288 = sphi 0, %s290
      %s291 = sphi 0, %s288
      %s292 = sphi 0, %s291
      %s308 = sphi 0, %s292
    $region4: #{tpu_custom_call.1} parent=1 // loop_header_branch
      %24 = sbr.rel (%p22) target = $region8
    $region5: #{tpu_custom_call.1} parent=1 // loop_body
      %s26 = ssub.s32 %s21, 1
      %s27 = ssub.s32 %s21, 2
      %s28 = sadd.s32 %s21, 1
      %s29 = ssub.s32 %s21, %s28
      %p30 = scmp.eq.s32.totalorder %s29, 0
      %s32 = sadd.s32 %s31, 1
      %s33 = scalar_select %p30, %s31, %s32
      %p36 = pneg %p30
      %p37 = scmp.eq.s32.totalorder %s21, 1
      %p38 = por %p36, %p37
      %p39 = scmp.ne.s32.totalorder %s31, %s34
      %p40 = scmp.eq.s32.totalorder %s21, 0
      %p41 = por %p39, %p40
      %p42 = scmp.ne.s32.totalorder %s31, %s34
      %p43 = scmp.eq.s32.totalorder %s26, 1
      %p44 = por %p42, %p43
      %p45 = scmp.ne.s32.totalorder %s34, %s35
      %p46 = scmp.eq.s32.totalorder %s26, 0
      %p47 = por %p45, %p46
      %p48 = scmp.ne.s32.totalorder %s34, %s35
      %p49 = scmp.eq.s32.totalorder %s27, 1
      %p50 = por %p48, %p49
      %p52 = scmp.ne.s32.totalorder %s35, %s51
      %p53 = scmp.eq.s32.totalorder %s27, 0
      %p54 = por %p52, %p53
      %s56 = sadd.s32 %s55, 1
      %p59 = scmp.eq.s32.totalorder %s21, 1
      %p60 = scmp.ne.s32.totalorder %s55, %s57
      %p61 = scmp.eq.s32.totalorder %s21, 0
      %p62 = por %p60, %p61
      %p63 = scmp.ne.s32.totalorder %s55, %s57
      %p64 = scmp.eq.s32.totalorder %s26, 1
      %p65 = por %p63, %p64
      %p66 = scmp.ne.s32.totalorder %s57, %s58
      %p67 = scmp.eq.s32.totalorder %s26, 0
      %p68 = por %p66, %p67
      %p69 = scmp.ne.s32.totalorder %s57, %s58
      %p70 = scmp.eq.s32.totalorder %s27, 1
      %p71 = por %p69, %p70
      %p73 = scmp.ne.s32.totalorder %s58, %s72
      %p74 = scmp.eq.s32.totalorder %s27, 0
      %p75 = por %p73, %p74
      %s77 = sadd.s32 %s76, 1
      %p80 = scmp.eq.s32.totalorder %s21, 1
      %p81 = scmp.ne.s32.totalorder %s76, %s78
      %p82 = scmp.eq.s32.totalorder %s21, 0
      %p83 = por %p81, %p82
      %p84 = scmp.ne.s32.totalorder %s76, %s78
      %p85 = scmp.eq.s32.totalorder %s26, 1
      %p86 = por %p84, %p85
      %p87 = scmp.ne.s32.totalorder %s78, %s79
      %p88 = scmp.eq.s32.totalorder %s26, 0
      %p89 = por %p87, %p88
      %p90 = scmp.ne.s32.totalorder %s78, %s79
      %p91 = scmp.eq.s32.totalorder %s27, 1
      %p92 = por %p90, %p91
      %p94 = scmp.ne.s32.totalorder %s79, %s93
      %p95 = scmp.eq.s32.totalorder %s27, 0
      %p96 = por %p94, %p95
      %s98 = sadd.s32 %s97, 1
      %p101 = scmp.eq.s32.totalorder %s21, 1
      %p102 = scmp.ne.s32.totalorder %s97, %s99
      %p103 = scmp.eq.s32.totalorder %s21, 0
      %p104 = por %p102, %p103
      %p105 = scmp.ne.s32.totalorder %s97, %s99
      %p106 = scmp.eq.s32.totalorder %s26, 1
      %p107 = por %p105, %p106
      %p108 = scmp.ne.s32.totalorder %s99, %s100
      %p109 = scmp.eq.s32.totalorder %s26, 0
      %p110 = por %p108, %p109
      %p111 = scmp.ne.s32.totalorder %s99, %s100
      %p112 = scmp.eq.s32.totalorder %s27, 1
      %p113 = por %p111, %p112
      %p115 = scmp.ne.s32.totalorder %s100, %s114
      %p116 = scmp.eq.s32.totalorder %s27, 0
      %p117 = por %p115, %p116
      %s119 = sadd.s32 %s118, 1
      %p122 = scmp.eq.s32.totalorder %s21, 1
      %p123 = scmp.ne.s32.totalorder %s118, %s120
      %p124 = scmp.eq.s32.totalorder %s21, 0
      %p125 = por %p123, %p124
      %p126 = scmp.ne.s32.totalorder %s118, %s120
      %p127 = scmp.eq.s32.totalorder %s26, 1
      %p128 = por %p126, %p127
      %p129 = scmp.ne.s32.totalorder %s120, %s121
      %p130 = scmp.eq.s32.totalorder %s26, 0
      %p131 = por %p129, %p130
      %p132 = scmp.ne.s32.totalorder %s120, %s121
      %p133 = scmp.eq.s32.totalorder %s27, 1
      %p134 = por %p132, %p133
      %p136 = scmp.ne.s32.totalorder %s121, %s135
      %p137 = scmp.eq.s32.totalorder %s27, 0
      %p138 = por %p136, %p137
      %s140 = sadd.s32 %s139, 1
      %p143 = scmp.eq.s32.totalorder %s21, 1
      %p144 = scmp.ne.s32.totalorder %s139, %s141
      %p145 = scmp.eq.s32.totalorder %s21, 0
      %p146 = por %p144, %p145
      %p147 = scmp.ne.s32.totalorder %s139, %s141
      %p148 = scmp.eq.s32.totalorder %s26, 1
      %p149 = por %p147, %p148
      %p150 = scmp.ne.s32.totalorder %s141, %s142
      %p151 = scmp.eq.s32.totalorder %s26, 0
      %p152 = por %p150, %p151
      %p153 = scmp.ne.s32.totalorder %s141, %s142
      %p154 = scmp.eq.s32.totalorder %s27, 1
      %p155 = por %p153, %p154
      %p157 = scmp.ne.s32.totalorder %s142, %s156
      %p158 = scmp.eq.s32.totalorder %s27, 0
      %p159 = por %p157, %p158
      %s161 = sadd.s32 %s160, 1
      %p164 = scmp.eq.s32.totalorder %s21, 1
      %p165 = scmp.ne.s32.totalorder %s160, %s162
      %p166 = scmp.eq.s32.totalorder %s21, 0
      %p167 = por %p165, %p166
      %p168 = scmp.ne.s32.totalorder %s160, %s162
      %p169 = scmp.eq.s32.totalorder %s26, 1
      %p170 = por %p168, %p169
      %p171 = scmp.ne.s32.totalorder %s162, %s163
      %p172 = scmp.eq.s32.totalorder %s26, 0
      %p173 = por %p171, %p172
      %p174 = scmp.ne.s32.totalorder %s162, %s163
      %p175 = scmp.eq.s32.totalorder %s27, 1
      %p176 = por %p174, %p175
      %p178 = scmp.ne.s32.totalorder %s163, %s177
      %p179 = scmp.eq.s32.totalorder %s27, 0
      %p180 = por %p178, %p179
      %s182 = sadd.s32 %s181, 1
      %p185 = scmp.eq.s32.totalorder %s21, 1
      %p186 = scmp.ne.s32.totalorder %s181, %s183
      %p187 = scmp.eq.s32.totalorder %s21, 0
      %p188 = por %p186, %p187
      %p189 = scmp.ne.s32.totalorder %s181, %s183
      %p190 = scmp.eq.s32.totalorder %s26, 1
      %p191 = por %p189, %p190
      %p192 = scmp.ne.s32.totalorder %s183, %s184
      %p193 = scmp.eq.s32.totalorder %s26, 0
      %p194 = por %p192, %p193
      %p195 = scmp.ne.s32.totalorder %s183, %s184
      %p196 = scmp.eq.s32.totalorder %s27, 1
      %p197 = por %p195, %p196
      %p199 = scmp.ne.s32.totalorder %s184, %s198
      %p200 = scmp.eq.s32.totalorder %s27, 0
      %p201 = por %p199, %p200
      %s203 = sadd.s32 %s202, 1
      %p206 = scmp.eq.s32.totalorder %s21, 1
      %p207 = scmp.ne.s32.totalorder %s202, %s204
      %p208 = scmp.eq.s32.totalorder %s21, 0
      %p209 = por %p207, %p208
      %p210 = scmp.ne.s32.totalorder %s202, %s204
      %p211 = scmp.eq.s32.totalorder %s26, 1
      %p212 = por %p210, %p211
      %p213 = scmp.ne.s32.totalorder %s204, %s205
      %p214 = scmp.eq.s32.totalorder %s26, 0
      %p215 = por %p213, %p214
      %p216 = scmp.ne.s32.totalorder %s204, %s205
      %p217 = scmp.eq.s32.totalorder %s27, 1
      %p218 = por %p216, %p217
      %p220 = scmp.ne.s32.totalorder %s205, %s219
      %p221 = scmp.eq.s32.totalorder %s27, 0
      %p222 = por %p220, %p221
      %s224 = sadd.s32 %s223, 1
      %p227 = scmp.eq.s32.totalorder %s21, 1
      %p228 = scmp.ne.s32.totalorder %s223, %s225
      %p229 = scmp.eq.s32.totalorder %s21, 0
      %p230 = por %p228, %p229
      %p231 = scmp.ne.s32.totalorder %s223, %s225
      %p232 = scmp.eq.s32.totalorder %s26, 1
      %p233 = por %p231, %p232
      %p234 = scmp.ne.s32.totalorder %s225, %s226
      %p235 = scmp.eq.s32.totalorder %s26, 0
      %p236 = por %p234, %p235
      %p237 = scmp.ne.s32.totalorder %s225, %s226
      %p238 = scmp.eq.s32.totalorder %s27, 1
      %p239 = por %p237, %p238
      %p241 = scmp.ne.s32.totalorder %s226, %s240
      %p242 = scmp.eq.s32.totalorder %s27, 0
      %p243 = por %p241, %p242
      %s245 = sadd.s32 %s244, 1
      %p248 = scmp.eq.s32.totalorder %s21, 1
      %p249 = scmp.ne.s32.totalorder %s244, %s246
      %p250 = scmp.eq.s32.totalorder %s21, 0
      %p251 = por %p249, %p250
      %p252 = scmp.ne.s32.totalorder %s244, %s246
      %p253 = scmp.eq.s32.totalorder %s26, 1
      %p254 = por %p252, %p253
      %p255 = scmp.ne.s32.totalorder %s246, %s247
      %p256 = scmp.eq.s32.totalorder %s26, 0
      %p257 = por %p255, %p256
      %p258 = scmp.ne.s32.totalorder %s246, %s247
      %p259 = scmp.eq.s32.totalorder %s27, 1
      %p260 = por %p258, %p259
      %p262 = scmp.ne.s32.totalorder %s247, %s261
      %p263 = scmp.eq.s32.totalorder %s27, 0
      %p264 = por %p262, %p263
      %s266 = sadd.s32 %s265, 1
      %p269 = scmp.eq.s32.totalorder %s21, 1
      %p270 = scmp.ne.s32.totalorder %s265, %s267
      %p271 = scmp.eq.s32.totalorder %s21, 0
      %p272 = por %p270, %p271
      %p273 = scmp.ne.s32.totalorder %s265, %s267
      %p274 = scmp.eq.s32.totalorder %s26, 1
      %p275 = por %p273, %p274
      %p276 = scmp.ne.s32.totalorder %s267, %s268
      %p277 = scmp.eq.s32.totalorder %s26, 0
      %p278 = por %p276, %p277
      %p279 = scmp.ne.s32.totalorder %s267, %s268
      %p280 = scmp.eq.s32.totalorder %s27, 1
      %p281 = por %p279, %p280
      %p283 = scmp.ne.s32.totalorder %s268, %s282
      %p284 = scmp.eq.s32.totalorder %s27, 0
      %p285 = por %p283, %p284
      %s286 = ssub.s32 %s21, %s28
      %p287 = scmp.eq.s32.totalorder %s286, 0
      %s289 = sadd.s32 %s288, 1
      %s290 = scalar_select %p287, %s288, %s289
      %p293 = pneg %p287
      %p294 = scmp.eq.s32.totalorder %s21, 1
      %p295 = por %p293, %p294
      %p296 = scmp.ne.s32.totalorder %s288, %s291
      %p297 = scmp.eq.s32.totalorder %s21, 0
      %p298 = por %p296, %p297
      %p299 = scmp.ne.s32.totalorder %s288, %s291
      %p300 = scmp.eq.s32.totalorder %s26, 1
      %p301 = por %p299, %p300
      %p302 = scmp.ne.s32.totalorder %s291, %s292
      %p303 = scmp.eq.s32.totalorder %s26, 0
      %p304 = por %p302, %p303
      %p305 = scmp.ne.s32.totalorder %s291, %s292
      %p306 = scmp.eq.s32.totalorder %s27, 1
      %p307 = por %p305, %p306
      %p309 = scmp.ne.s32.totalorder %s292, %s308
      %p310 = scmp.eq.s32.totalorder %s27, 0
      %p311 = por %p309, %p310
      %p312 = scmp.le.s32.totalorder 1, %s21
      %p313 = scmp.lt.s32.totalorder %s21, 3
      %p314 = pnand %p312, %p313
      %p315 = pneg %p314
      // Predicated region
      $region9: #{tpu_custom_call.1} parent=5 // pred_check
        _
      $region10: #{tpu_custom_call.1} parent=5 // pred_check_branch
        %317 = sbr.rel (%p314) target = $region12
      $region11: #{tpu_custom_call.1} parent=5 // pred_region
        %s318 = ssub.s32 %s21, 1
        // Predicated region
        $region13: #{tpu_custom_call.1} parent=11 // pred_check
          %p319 = pneg %p68
        $region14: #{tpu_custom_call.1} parent=11 // pred_check_branch
          %321 = sbr.rel (%p319) target = $region16
        $region15: #{tpu_custom_call.1} parent=11 // pred_region
          _
        $region16: #{tpu_custom_call.1} parent=11 // pred_fallthru
          _
        // Predicated region
        $region17: #{tpu_custom_call.1} parent=11 // pred_check
          %p322 = pneg %p89
        $region18: #{tpu_custom_call.1} parent=11 // pred_check_branch
          %324 = sbr.rel (%p322) target = $region20
        $region19: #{tpu_custom_call.1} parent=11 // pred_region
          _
        $region20: #{tpu_custom_call.1} parent=11 // pred_fallthru
          _
        // Predicated region
        $region21: #{tpu_custom_call.1} parent=11 // pred_check
          %p325 = pneg %p110
        $region22: #{tpu_custom_call.1} parent=11 // pred_check_branch
          %327 = sbr.rel (%p325) target = $region24
        $region23: #{tpu_custom_call.1} parent=11 // pred_region
          _
        $region24: #{tpu_custom_call.1} parent=11 // pred_fallthru
          _
        // Predicated region
        $region25: #{tpu_custom_call.1} parent=11 // pred_check
          %p328 = pneg %p131
        $region26: #{tpu_custom_call.1} parent=11 // pred_check_branch
          %330 = sbr.rel (%p328) target = $region28
        $region27: #{tpu_custom_call.1} parent=11 // pred_region
          _
        $region28: #{tpu_custom_call.1} parent=11 // pred_fallthru
          _
        // Predicated region
        $region29: #{tpu_custom_call.1} parent=11 // pred_check
          %p331 = pneg %p152
        $region30: #{tpu_custom_call.1} parent=11 // pred_check_branch
          %333 = sbr.rel (%p331) target = $region32
        $region31: #{tpu_custom_call.1} parent=11 // pred_region
          _
        $region32: #{tpu_custom_call.1} parent=11 // pred_fallthru
          _
        // Predicated region
        $region33: #{tpu_custom_call.1} parent=11 // pred_check
          %p334 = pneg %p173
        $region34: #{tpu_custom_call.1} parent=11 // pred_check_branch
          %336 = sbr.rel (%p334) target = $region36
        $region35: #{tpu_custom_call.1} parent=11 // pred_region
          _
        $region36: #{tpu_custom_call.1} parent=11 // pred_fallthru
          _
        // Predicated region
        $region37: #{tpu_custom_call.1} parent=11 // pred_check
          %p337 = pneg %p194
        $region38: #{tpu_custom_call.1} parent=11 // pred_check_branch
          %339 = sbr.rel (%p337) target = $region40
        $region39: #{tpu_custom_call.1} parent=11 // pred_region
          _
        $region40: #{tpu_custom_call.1} parent=11 // pred_fallthru
          _
        // Predicated region
        $region41: #{tpu_custom_call.1} parent=11 // pred_check
          %p340 = pneg %p215
        $region42: #{tpu_custom_call.1} parent=11 // pred_check_branch
          %342 = sbr.rel (%p340) target = $region44
        $region43: #{tpu_custom_call.1} parent=11 // pred_region
          _
        $region44: #{tpu_custom_call.1} parent=11 // pred_fallthru
          _
        // Predicated region
        $region45: #{tpu_custom_call.1} parent=11 // pred_check
          %p343 = pneg %p236
        $region46: #{tpu_custom_call.1} parent=11 // pred_check_branch
          %345 = sbr.rel (%p343) target = $region48
        $region47: #{tpu_custom_call.1} parent=11 // pred_region
          _
        $region48: #{tpu_custom_call.1} parent=11 // pred_fallthru
          _
        // Predicated region
        $region49: #{tpu_custom_call.1} parent=11 // pred_check
          %p346 = pneg %p257
        $region50: #{tpu_custom_call.1} parent=11 // pred_check_branch
          %348 = sbr.rel (%p346) target = $region52
        $region51: #{tpu_custom_call.1} parent=11 // pred_region
          _
        $region52: #{tpu_custom_call.1} parent=11 // pred_fallthru
          _
        // Predicated region
        $region53: #{tpu_custom_call.1} parent=11 // pred_check
          %p349 = pneg %p278
        $region54: #{tpu_custom_call.1} parent=11 // pred_check_branch
          %351 = sbr.rel (%p349) target = $region56
        $region55: #{tpu_custom_call.1} parent=11 // pred_region
          _
        $region56: #{tpu_custom_call.1} parent=11 // pred_fallthru
          _
      $region12: #{tpu_custom_call.1} parent=5 // pred_fallthru
        _
      %p352 = scmp.lt.s32.totalorder %s21, 2
      // Predicated region
      $region57: #{tpu_custom_call.1} parent=5 // pred_check
        %p353 = pneg %p352
      $region58: #{tpu_custom_call.1} parent=5 // pred_check_branch
        %355 = sbr.rel (%p353) target = $region60
      $region59: #{tpu_custom_call.1} parent=5 // pred_region
        // Predicated region
        $region61: #{tpu_custom_call.1} parent=59 // pred_check
          %p356 = pneg %p41
        $region62: #{tpu_custom_call.1} parent=59 // pred_check_branch
          %358 = sbr.rel (%p356) target = $region64
        $region63: #{tpu_custom_call.1} parent=59 // pred_region
          %p359 = scmp.lt.s32.totalorder %s21, 1
          %s360 = scalar_select %p359, %s21, 1
          %s361 = smul.addr %s360, 8
          %s362 = scalar_lea.vmem %s0, %s361
        $region64: #{tpu_custom_call.1} parent=59 // pred_fallthru
          _
      $region60: #{tpu_custom_call.1} parent=5 // pred_fallthru
        _
      %p363 = scmp.le.s32.totalorder 1, %s21
      %p364 = scmp.lt.s32.totalorder %s21, 3
      %p365 = pnand %p363, %p364
      %p366 = pneg %p365
      // Predicated region
      $region65: #{tpu_custom_call.1} parent=5 // pred_check
        _
      $region66: #{tpu_custom_call.1} parent=5 // pred_check_branch
        %368 = sbr.rel (%p365) target = $region68
      $region67: #{tpu_custom_call.1} parent=5 // pred_region
        %s369 = ssub.s32 %s21, 1
        %p370 = scmp.lt.s32.totalorder %s26, 1
        %s371 = scalar_select %p370, %s26, 1
        %s372 = smul.addr %s371, 8
        %s373 = scalar_lea.vmem %s0, %s372
        %p374 = pneg %p47
        %p375 = pneg %p44
        %p376 = pneg %p68
        %p377 = pneg %p65
        %p378 = pneg %p89
        %p379 = pneg %p86
        %p380 = pneg %p110
        %p381 = pneg %p107
        %p382 = pneg %p131
        %p383 = pneg %p128
        %p384 = pneg %p152
        %p385 = pneg %p149
        %p386 = pneg %p173
        %p387 = pneg %p170
        %p388 = pneg %p194
        %p389 = pneg %p191
        %p390 = pneg %p215
        %p391 = pneg %p212
        %p392 = pneg %p236
        %p393 = pneg %p233
        %p394 = pneg %p257
        %p395 = pneg %p254
        %p396 = pneg %p278
        %p397 = pneg %p275
        %p398 = pneg %p304
        %p399 = pneg %p301
        %s400 = sand.u32 %s291, 1
        %s401 = scalar_lea.sflag [#allocation4], %s400
        %s402 = sand.u32 %s291, 1
        %s403 = smul.addr %s402, 8
        %s404 = scalar_lea.vmem [#allocation3], %s403
        %p405 = scmp.lt.s32.totalorder %s26, 1
        %s406 = scalar_select %p405, %s26, 1
        %s407 = smul.addr %s406, 8
        %s408 = scalar_lea.vmem %s0, %s407
        %v410 = vld [vmem:[%s408] sm:$0xff]
        %v411 = vld [vmem:[%s1] sm:$0x1]
        %v412 = vld [vmem:[%s2] sm:$0x1]
        %vm413 = vcmask 261120
        %v414 = vsel %vm413, %v410, 0.0
        %415 = vadd.xlane.f32.xlu0 %v414
        %v416 = vpop.xlane.xlu0 %415
        %v417 = vrcp.pop 32.0
        %v418 = vmul.f32 %v416, %v417
        %v419 = vsub.f32 %v410, %v418
        %v420 = vmul.f32 %v419, %v419
        %v421 = vsel %vm413, %v420, 0.0
        %422 = vadd.xlane.f32.xlu0 %v421
        %v423 = vpop.xlane.xlu0 %422
        %v424 = vmul.f32 %v423, %v417
        %v425 = vadd.f32 %v424, 1e-05
        %v426 = vrsqrt.pop %v425
        %v427 = vmul.f32 %v419, %v426
        %v429 = vlaneseq
        %v430 = vshrl.u32 %v429, 7
        %v431 = vsub.s32 0, %v430
        %v432 = vrot.slane %v411, %v431
        %v434 = vmul.f32 %v427, %v432
        %v436 = vlaneseq
        %v437 = vshrl.u32 %v436, 7
        %v438 = vsub.s32 0, %v437
        %v439 = vrot.slane %v412, %v438
        %v441 = vadd.f32 %v434, %v439
        %v442 = vpack.c.bf16 %v441, %v441
        %v443 = vld [vmem:[%s3] sm:$0xf]
        %v444 = vld [vmem:[%s3 + $0x4] sm:$0xf]
        %v445 = vld [vmem:[%s3 + $0x8] sm:$0xf]
        %v446 = vld [vmem:[%s3 + $0xc] sm:$0xf]
        %v451 = vunpack.c.l.b16 %v443
        %v452 = vunpack.c.l.b16 %v444
        %v453 = vunpack.c.l.b16 %v445
        %v454 = vunpack.c.l.b16 %v446
        %v455 = vpack.c.b16 %v452, %v451
        %v456 = vpack.c.b16 %v454, %v453
        %v460 = vsel %vm413, %v442, 0
        %462 = vmatprep.subr.bf16.mxu0 0
        %463 = vmatpush1.bf16.msra.mxu0 0
        %464 = vmatprep.subr.bf16.mxu0 0
        %465 = vmatpush1.bf16.msra.mxu0 0
        %466 = vmatprep.subr.bf16.mxu0 0
        %467 = vmatpush1.bf16.msra.mxu0 0
        %468 = vmatprep.subr.bf16.mxu0 0
        %469 = vmatpush1.bf16.msra.mxu0 0
        %470 = vmatprep.subr.bf16.mxu0 0
        %471 = vmatpush1.bf16.msra.mxu0 0
        %472 = vmatprep.subr.bf16.mxu0 0
        %473 = vmatpush1.bf16.msra.mxu0 0
        %474 = vmatprep.subr.bf16.mxu0 0
        %475 = vmatpush1.bf16.msra.mxu0 %v456
        %476 = vmatprep.subr.bf16.mxu0 0
        %477 = vmatpush1.bf16.msra.mxu0 %v455
        %478 = vmatprep.subr.bf16.mxu0 0
        %479 = vmatpush2.bf16.msra.mxu0 0
        %480 = vmatprep.subr.bf16.mxu0 0
        %481 = vmatpush2.bf16.msra.mxu0 0
        %482 = vmatprep.subr.bf16.mxu0 0
        %483 = vmatpush2.bf16.msra.mxu0 0
        %484 = vmatprep.subr.bf16.mxu0 0
        %485 = vmatpush2.bf16.msra.mxu0 0
        %486 = vmatprep.subr.bf16.mxu0 0
        %487 = vmatpush2.bf16.msra.mxu0 0
        %488 = vmatprep.subr.bf16.mxu0 0
        %489 = vmatpush2.bf16.msra.mxu0 0
        %490 = vmatprep.subr.bf16.mxu0 0
        %491 = vmatpush2.bf16.msra.mxu0 0
        %492 = vmatprep.subr.bf16.mxu0 0
        %493 = vmatpush2.bf16.msra.mxu0 0
        %494 = vmatprep.mubr.bf16.mxu0 0
        %495 = vmatmul.mubr.bf16.gmra.mxu0 %v460
        %v496 = vpop.f32.mrf.mxu0
        %v497 = vadd.f32 0.0, %v496
        %v498 = vpop.f32.mrf.mxu0
        %v499 = vpop.f32.mrf.mxu0
        %v500 = vpop.f32.mrf.mxu0
        %501 = vdwg.mxu0
        %v502 = vpack.c.bf16 %v497, %v497
        %v503 = vlaneseq
        %v504 = vshrl.u32 %v503, 7
        %v505 = vlaneseq
        %v506 = vand.u32 %v505, 127
        %vm507 = vcmp.le.s32.totalorder %v506, %v504
        %509 = vrot.lane.b32.xlu0 %v502, 96
        %v510 = vpop.permute.xlu0 %509
        %vm511 = vcmask 64512
        %v513 = vsel %vm511, %v502, 0
        %v516 = vsel %vm511, %v510, 0
        %518 = vmatprep.subr.bf16.mxu0 0
        %519 = vmatpush1.bf16.xpose.msra.mxu0 0
        %520 = vmatprep.subr.bf16.mxu0 0
        %521 = vmatpush1.bf16.xpose.msra.mxu0 0
        %522 = vmatprep.subr.bf16.mxu0 0
        %523 = vmatpush1.bf16.xpose.msra.mxu0 0
        %524 = vmatprep.subr.bf16.mxu0 0
        %525 = vmatpush1.bf16.xpose.msra.mxu0 0
        %526 = vmatprep.subr.bf16.mxu0 0
        %527 = vmatpush1.bf16.xpose.msra.mxu0 0
        %528 = vmatprep.subr.bf16.mxu0 0
        %529 = vmatpush1.bf16.xpose.msra.mxu0 0
        %530 = vmatprep.subr.bf16.mxu0 0
        %531 = vmatpush1.bf16.xpose.msra.mxu0 0
        %532 = vmatprep.subr.bf16.mxu0 0
        %533 = vmatpush1.bf16.xpose.msra.mxu0 %v516
        %534 = vmatprep.subr.bf16.mxu0 0
        %535 = vmatpush2.bf16.xpose.msra.mxu0 0
        %536 = vmatprep.subr.bf16.mxu0 0
        %537 = vmatpush2.bf16.xpose.msra.mxu0 0
        %538 = vmatprep.subr.bf16.mxu0 0
        %539 = vmatpush2.bf16.xpose.msra.mxu0 0
        %540 = vmatprep.subr.bf16.mxu0 0
        %541 = vmatpush2.bf16.xpose.msra.mxu0 0
        %542 = vmatprep.subr.bf16.mxu0 0
        %543 = vmatpush2.bf16.xpose.msra.mxu0 0
        %544 = vmatprep.subr.bf16.mxu0 0
        %545 = vmatpush2.bf16.xpose.msra.mxu0 0
        %546 = vmatprep.subr.bf16.mxu0 0
        %547 = vmatpush2.bf16.xpose.msra.mxu0 0
        %548 = vmatprep.subr.bf16.mxu0 0
        %549 = vmatpush2.bf16.xpose.msra.mxu0 0
        %550 = vmatprep.mubr.bf16.mxu0 0
        %551 = vmatmul.mubr.bf16.gmra.mxu0 %v513
        %v552 = vpop.f32.mrf.mxu0
        %v553 = vadd.f32 0.0, %v552
        %v554 = vpop.f32.mrf.mxu0
        %v555 = vpop.f32.mrf.mxu0
        %v556 = vpop.f32.mrf.mxu0
        %557 = vdwg.mxu0
        %v558 = vsel %vm507, %v553, -inf
        %v559 = vsel %vm511, %v558, -inf
        %560 = vmax.xlane.f32.xlu0 %v559
        %v561 = vpop.xlane.xlu0 %560
        %v562 = vsub.f32 %v558, %v561
        %v563 = vmul.f32 %v562, 1.442695
        %v564 = vpow.pop %v563
        %v565 = vsel %vm511, %v564, 0.0
        %566 = vadd.xlane.f32.xlu0 %v565
        %v567 = vpop.xlane.xlu0 %566
        %v568 = vrcp.pop %v567
        %v569 = vmul.f32 %v564, %v568
        %v570 = vpack.c.bf16 %v569, %v569
        %571 = vrot.lane.b32.xlu0 %v502, 64
        %v572 = vpop.permute.xlu0 %571
        %v574 = vsel %vm511, %v570, 0
        %vm576 = vcmask 1043456
        %v578 = vsel %vm576, %v572, 0
        %580 = vmatprep.subr.bf16.mxu0 0
        %581 = vmatpush1.bf16.msra.mxu0 0
        %582 = vmatprep.subr.bf16.mxu0 0
        %583 = vmatpush1.bf16.msra.mxu0 0
        %584 = vmatprep.subr.bf16.mxu0 0
        %585 = vmatpush1.bf16.msra.mxu0 0
        %586 = vmatprep.subr.bf16.mxu0 0
        %587 = vmatpush1.bf16.msra.mxu0 0
        %588 = vmatprep.subr.bf16.mxu0 0
        %589 = vmatpush1.bf16.msra.mxu0 0
        %590 = vmatprep.subr.bf16.mxu0 0
        %591 = vmatpush1.bf16.msra.mxu0 0
        %592 = vmatprep.subr.bf16.mxu0 0
        %593 = vmatpush1.bf16.msra.mxu0 0
        %594 = vmatprep.subr.bf16.mxu0 0
        %595 = vmatpush1.bf16.msra.mxu0 %v578
        %596 = vmatprep.subr.bf16.mxu0 0
        %597 = vmatpush2.bf16.msra.mxu0 0
        %598 = vmatprep.subr.bf16.mxu0 0
        %599 = vmatpush2.bf16.msra.mxu0 0
        %600 = vmatprep.subr.bf16.mxu0 0
        %601 = vmatpush2.bf16.msra.mxu0 0
        %602 = vmatprep.subr.bf16.mxu0 0
        %603 = vmatpush2.bf16.msra.mxu0 0
        %604 = vmatprep.subr.bf16.mxu0 0
        %605 = vmatpush2.bf16.msra.mxu0 0
        %606 = vmatprep.subr.bf16.mxu0 0
        %607 = vmatpush2.bf16.msra.mxu0 0
        %608 = vmatprep.subr.bf16.mxu0 0
        %609 = vmatpush2.bf16.msra.mxu0 0
        %610 = vmatprep.subr.bf16.mxu0 0
        %611 = vmatpush2.bf16.msra.mxu0 0
        %612 = vmatprep.mubr.bf16.mxu0 0
        %613 = vmatmul.mubr.bf16.gmra.mxu0 %v574
        %v614 = vpop.f32.mrf.mxu0
        %v615 = vadd.f32 0.0, %v614
        %v616 = vpop.f32.mrf.mxu0
        %v617 = vpop.f32.mrf.mxu0
        %v618 = vpop.f32.mrf.mxu0
        %619 = vdwg.mxu0
        %v620 = vpack.c.bf16 %v615, %v615
        %vm621 = vcmask 60416
        %622 = vst.msk [vmem:[#allocation2] sm:$0xf] %vm621, %v620
        %623 = vrot.lane.b32.xlu0 %v502, 120
        %v624 = vpop.permute.xlu0 %623
        %625 = vrot.lane.b32.xlu0 %v502, 88
        %v626 = vpop.permute.xlu0 %625
        %v628 = vsel %vm511, %v624, 0
        %v631 = vsel %vm511, %v626, 0
        %633 = vmatprep.subr.bf16.mxu0 0
        %634 = vmatpush1.bf16.xpose.msra.mxu0 0
        %635 = vmatprep.subr.bf16.mxu0 0
        %636 = vmatpush1.bf16.xpose.msra.mxu0 0
        %637 = vmatprep.subr.bf16.mxu0 0
        %638 = vmatpush1.bf16.xpose.msra.mxu0 0
        %639 = vmatprep.subr.bf16.mxu0 0
        %640 = vmatpush1.bf16.xpose.msra.mxu0 0
        %641 = vmatprep.subr.bf16.mxu0 0
        %642 = vmatpush1.bf16.xpose.msra.mxu0 0
        %643 = vmatprep.subr.bf16.mxu0 0
        %644 = vmatpush1.bf16.xpose.msra.mxu0 0
        %645 = vmatprep.subr.bf16.mxu0 0
        %646 = vmatpush1.bf16.xpose.msra.mxu0 0
        %647 = vmatprep.subr.bf16.mxu0 0
        %648 = vmatpush1.bf16.xpose.msra.mxu0 %v631
        %649 = vmatprep.subr.bf16.mxu0 0
        %650 = vmatpush2.bf16.xpose.msra.mxu0 0
        %651 = vmatprep.subr.bf16.mxu0 0
        %652 = vmatpush2.bf16.xpose.msra.mxu0 0
        %653 = vmatprep.subr.bf16.mxu0 0
        %654 = vmatpush2.bf16.xpose.msra.mxu0 0
        %655 = vmatprep.subr.bf16.mxu0 0
        %656 = vmatpush2.bf16.xpose.msra.mxu0 0
        %657 = vmatprep.subr.bf16.mxu0 0
        %658 = vmatpush2.bf16.xpose.msra.mxu0 0
        %659 = vmatprep.subr.bf16.mxu0 0
        %660 = vmatpush2.bf16.xpose.msra.mxu0 0
        %661 = vmatprep.subr.bf16.mxu0 0
        %662 = vmatpush2.bf16.xpose.msra.mxu0 0
        %663 = vmatprep.subr.bf16.mxu0 0
        %664 = vmatpush2.bf16.xpose.msra.mxu0 0
        %665 = vmatprep.mubr.bf16.mxu0 0
        %666 = vmatmul.mubr.bf16.gmra.mxu0 %v628
        %v667 = vpop.f32.mrf.mxu0
        %v668 = vadd.f32 0.0, %v667
        %v669 = vpop.f32.mrf.mxu0
        %v670 = vpop.f32.mrf.mxu0
        %v671 = vpop.f32.mrf.mxu0
        %672 = vdwg.mxu0
        %v673 = vsel %vm507, %v668, -inf
        %v674 = vsel %vm511, %v673, -inf
        %675 = vmax.xlane.f32.xlu0 %v674
        %v676 = vpop.xlane.xlu0 %675
        %v677 = vsub.f32 %v673, %v676
        %v678 = vmul.f32 %v677, 1.442695
        %v679 = vpow.pop %v678
        %v680 = vsel %vm511, %v679, 0.0
        %681 = vadd.xlane.f32.xlu0 %v680
        %v682 = vpop.xlane.xlu0 %681
        %v683 = vrcp.pop %v682
        %v684 = vmul.f32 %v679, %v683
        %v685 = vpack.c.bf16 %v684, %v684
        %686 = vrot.lane.b32.xlu0 %v502, 56
        %v687 = vpop.permute.xlu0 %686
        %v689 = vsel %vm511, %v685, 0
        %v692 = vsel %vm576, %v687, 0
        %694 = vmatprep.subr.bf16.mxu0 0
        %695 = vmatpush1.bf16.msra.mxu0 0
        %696 = vmatprep.subr.bf16.mxu0 0
        %697 = vmatpush1.bf16.msra.mxu0 0
        %698 = vmatprep.subr.bf16.mxu0 0
        %699 = vmatpush1.bf16.msra.mxu0 0
        %700 = vmatprep.subr.bf16.mxu0 0
        %701 = vmatpush1.bf16.msra.mxu0 0
        %702 = vmatprep.subr.bf16.mxu0 0
        %703 = vmatpush1.bf16.msra.mxu0 0
        %704 = vmatprep.subr.bf16.mxu0 0
        %705 = vmatpush1.bf16.msra.mxu0 0
        %706 = vmatprep.subr.bf16.mxu0 0
        %707 = vmatpush1.bf16.msra.mxu0 0
        %708 = vmatprep.subr.bf16.mxu0 0
        %709 = vmatpush1.bf16.msra.mxu0 %v692
        %710 = vmatprep.subr.bf16.mxu0 0
        %711 = vmatpush2.bf16.msra.mxu0 0
        %712 = vmatprep.subr.bf16.mxu0 0
        %713 = vmatpush2.bf16.msra.mxu0 0
        %714 = vmatprep.subr.bf16.mxu0 0
        %715 = vmatpush2.bf16.msra.mxu0 0
        %716 = vmatprep.subr.bf16.mxu0 0
        %717 = vmatpush2.bf16.msra.mxu0 0
        %718 = vmatprep.subr.bf16.mxu0 0
        %719 = vmatpush2.bf16.msra.mxu0 0
        %720 = vmatprep.subr.bf16.mxu0 0
        %721 = vmatpush2.bf16.msra.mxu0 0
        %722 = vmatprep.subr.bf16.mxu0 0
        %723 = vmatpush2.bf16.msra.mxu0 0
        %724 = vmatprep.subr.bf16.mxu0 0
        %725 = vmatpush2.bf16.msra.mxu0 0
        %726 = vmatprep.mubr.bf16.mxu0 0
        %727 = vmatmul.mubr.bf16.gmra.mxu0 %v689
        %v728 = vpop.f32.mrf.mxu0
        %v729 = vadd.f32 0.0, %v728
        %v730 = vpop.f32.mrf.mxu0
        %v731 = vpop.f32.mrf.mxu0
        %v732 = vpop.f32.mrf.mxu0
        %733 = vdwg.mxu0
        %v734 = vpack.c.bf16 %v729, %v729
        %v736 = vunpack.c.l.b16 %v734
        %v737 = vpack.c.b16 %v736, %v736
        %738 = vrot.lane.b32.xlu0 %v737, 8
        %v739 = vpop.permute.xlu0 %738
        %vm741 = vcmask 126016
        %742 = vst.msk [vmem:[#allocation2] sm:$0xf] %vm741, %v739
        %743 = vrot.lane.b32.xlu0 %v502, 112
        %v744 = vpop.permute.xlu0 %743
        %745 = vrot.lane.b32.xlu0 %v502, 80
        %v746 = vpop.permute.xlu0 %745
        %v748 = vsel %vm511, %v744, 0
        %v751 = vsel %vm511, %v746, 0
        %753 = vmatprep.subr.bf16.mxu0 0
        %754 = vmatpush1.bf16.xpose.msra.mxu0 0
        %755 = vmatprep.subr.bf16.mxu0 0
        %756 = vmatpush1.bf16.xpose.msra.mxu0 0
        %757 = vmatprep.subr.bf16.mxu0 0
        %758 = vmatpush1.bf16.xpose.msra.mxu0 0
        %759 = vmatprep.subr.bf16.mxu0 0
        %760 = vmatpush1.bf16.xpose.msra.mxu0 0
        %761 = vmatprep.subr.bf16.mxu0 0
        %762 = vmatpush1.bf16.xpose.msra.mxu0 0
        %763 = vmatprep.subr.bf16.mxu0 0
        %764 = vmatpush1.bf16.xpose.msra.mxu0 0
        %765 = vmatprep.subr.bf16.mxu0 0
        %766 = vmatpush1.bf16.xpose.msra.mxu0 0
        %767 = vmatprep.subr.bf16.mxu0 0
        %768 = vmatpush1.bf16.xpose.msra.mxu0 %v751
        %769 = vmatprep.subr.bf16.mxu0 0
        %770 = vmatpush2.bf16.xpose.msra.mxu0 0
        %771 = vmatprep.subr.bf16.mxu0 0
        %772 = vmatpush2.bf16.xpose.msra.mxu0 0
        %773 = vmatprep.subr.bf16.mxu0 0
        %774 = vmatpush2.bf16.xpose.msra.mxu0 0
        %775 = vmatprep.subr.bf16.mxu0 0
        %776 = vmatpush2.bf16.xpose.msra.mxu0 0
        %777 = vmatprep.subr.bf16.mxu0 0
        %778 = vmatpush2.bf16.xpose.msra.mxu0 0
        %779 = vmatprep.subr.bf16.mxu0 0
        %780 = vmatpush2.bf16.xpose.msra.mxu0 0
        %781 = vmatprep.subr.bf16.mxu0 0
        %782 = vmatpush2.bf16.xpose.msra.mxu0 0
        %783 = vmatprep.subr.bf16.mxu0 0
        %784 = vmatpush2.bf16.xpose.msra.mxu0 0
        %785 = vmatprep.mubr.bf16.mxu0 0
        %786 = vmatmul.mubr.bf16.gmra.mxu0 %v748
        %v787 = vpop.f32.mrf.mxu0
        %v788 = vadd.f32 0.0, %v787
        %v789 = vpop.f32.mrf.mxu0
        %v790 = vpop.f32.mrf.mxu0
        %v791 = vpop.f32.mrf.mxu0
        %792 = vdwg.mxu0
        %v793 = vsel %vm507, %v788, -inf
        %v794 = vsel %vm511, %v793, -inf
        %795 = vmax.xlane.f32.xlu0 %v794
        %v796 = vpop.xlane.xlu0 %795
        %v797 = vsub.f32 %v793, %v796
        %v798 = vmul.f32 %v797, 1.442695
        %v799 = vpow.pop %v798
        %v800 = vsel %vm511, %v799, 0.0
        %801 = vadd.xlane.f32.xlu0 %v800
        %v802 = vpop.xlane.xlu0 %801
        %v803 = vrcp.pop %v802
        %v804 = vmul.f32 %v799, %v803
        %v805 = vpack.c.bf16 %v804, %v804
        %806 = vrot.lane.b32.xlu0 %v502, 48
        %v807 = vpop.permute.xlu0 %806
        %v809 = vsel %vm511, %v805, 0
        %v812 = vsel %vm576, %v807, 0
        %814 = vmatprep.subr.bf16.mxu0 0
        %815 = vmatpush1.bf16.msra.mxu0 0
        %816 = vmatprep.subr.bf16.mxu0 0
        %817 = vmatpush1.bf16.msra.mxu0 0
        %818 = vmatprep.subr.bf16.mxu0 0
        %819 = vmatpush1.bf16.msra.mxu0 0
        %820 = vmatprep.subr.bf16.mxu0 0
        %821 = vmatpush1.bf16.msra.mxu0 0
        %822 = vmatprep.subr.bf16.mxu0 0
        %823 = vmatpush1.bf16.msra.mxu0 0
        %824 = vmatprep.subr.bf16.mxu0 0
        %825 = vmatpush1.bf16.msra.mxu0 0
        %826 = vmatprep.subr.bf16.mxu0 0
        %827 = vmatpush1.bf16.msra.mxu0 0
        %828 = vmatprep.subr.bf16.mxu0 0
        %829 = vmatpush1.bf16.msra.mxu0 %v812
        %830 = vmatprep.subr.bf16.mxu0 0
        %831 = vmatpush2.bf16.msra.mxu0 0
        %832 = vmatprep.subr.bf16.mxu0 0
        %833 = vmatpush2.bf16.msra.mxu0 0
        %834 = vmatprep.subr.bf16.mxu0 0
        %835 = vmatpush2.bf16.msra.mxu0 0
        %836 = vmatprep.subr.bf16.mxu0 0
        %837 = vmatpush2.bf16.msra.mxu0 0
        %838 = vmatprep.subr.bf16.mxu0 0
        %839 = vmatpush2.bf16.msra.mxu0 0
        %840 = vmatprep.subr.bf16.mxu0 0
        %841 = vmatpush2.bf16.msra.mxu0 0
        %842 = vmatprep.subr.bf16.mxu0 0
        %843 = vmatpush2.bf16.msra.mxu0 0
        %844 = vmatprep.subr.bf16.mxu0 0
        %845 = vmatpush2.bf16.msra.mxu0 0
        %846 = vmatprep.mubr.bf16.mxu0 0
        %847 = vmatmul.mubr.bf16.gmra.mxu0 %v809
        %v848 = vpop.f32.mrf.mxu0
        %v849 = vadd.f32 0.0, %v848
        %v850 = vpop.f32.mrf.mxu0
        %v851 = vpop.f32.mrf.mxu0
        %v852 = vpop.f32.mrf.mxu0
        %853 = vdwg.mxu0
        %v854 = vpack.c.bf16 %v849, %v849
        %v856 = vunpack.c.l.b16 %v854
        %v857 = vpack.c.b16 %v856, %v856
        %858 = vrot.lane.b32.xlu0 %v857, 16
        %v859 = vpop.permute.xlu0 %858
        %vm861 = vcmask 191616
        %862 = vst.msk [vmem:[#allocation2] sm:$0xf] %vm861, %v859
        %863 = vrot.lane.b32.xlu0 %v502, 104
        %v864 = vpop.permute.xlu0 %863
        %865 = vrot.lane.b32.xlu0 %v502, 72
        %v866 = vpop.permute.xlu0 %865
        %v868 = vsel %vm511, %v864, 0
        %v871 = vsel %vm511, %v866, 0
        %873 = vmatprep.subr.bf16.mxu0 0
        %874 = vmatpush1.bf16.xpose.msra.mxu0 0
        %875 = vmatprep.subr.bf16.mxu0 0
        %876 = vmatpush1.bf16.xpose.msra.mxu0 0
        %877 = vmatprep.subr.bf16.mxu0 0
        %878 = vmatpush1.bf16.xpose.msra.mxu0 0
        %879 = vmatprep.subr.bf16.mxu0 0
        %880 = vmatpush1.bf16.xpose.msra.mxu0 0
        %881 = vmatprep.subr.bf16.mxu0 0
        %882 = vmatpush1.bf16.xpose.msra.mxu0 0
        %883 = vmatprep.subr.bf16.mxu0 0
        %884 = vmatpush1.bf16.xpose.msra.mxu0 0
        %885 = vmatprep.subr.bf16.mxu0 0
        %886 = vmatpush1.bf16.xpose.msra.mxu0 0
        %887 = vmatprep.subr.bf16.mxu0 0
        %888 = vmatpush1.bf16.xpose.msra.mxu0 %v871
        %889 = vmatprep.subr.bf16.mxu0 0
        %890 = vmatpush2.bf16.xpose.msra.mxu0 0
        %891 = vmatprep.subr.bf16.mxu0 0
        %892 = vmatpush2.bf16.xpose.msra.mxu0 0
        %893 = vmatprep.subr.bf16.mxu0 0
        %894 = vmatpush2.bf16.xpose.msra.mxu0 0
        %895 = vmatprep.subr.bf16.mxu0 0
        %896 = vmatpush2.bf16.xpose.msra.mxu0 0
        %897 = vmatprep.subr.bf16.mxu0 0
        %898 = vmatpush2.bf16.xpose.msra.mxu0 0
        %899 = vmatprep.subr.bf16.mxu0 0
        %900 = vmatpush2.bf16.xpose.msra.mxu0 0
        %901 = vmatprep.subr.bf16.mxu0 0
        %902 = vmatpush2.bf16.xpose.msra.mxu0 0
        %903 = vmatprep.subr.bf16.mxu0 0
        %904 = vmatpush2.bf16.xpose.msra.mxu0 0
        %905 = vmatprep.mubr.bf16.mxu0 0
        %906 = vmatmul.mubr.bf16.gmra.mxu0 %v868
        %v907 = vpop.f32.mrf.mxu0
        %v908 = vadd.f32 0.0, %v907
        %v909 = vpop.f32.mrf.mxu0
        %v910 = vpop.f32.mrf.mxu0
        %v911 = vpop.f32.mrf.mxu0
        %912 = vdwg.mxu0
        %v913 = vsel %vm507, %v908, -inf
        %v914 = vsel %vm511, %v913, -inf
        %915 = vmax.xlane.f32.xlu0 %v914
        %v916 = vpop.xlane.xlu0 %915
        %v917 = vsub.f32 %v913, %v916
        %v918 = vmul.f32 %v917, 1.442695
        %v919 = vpow.pop %v918
        %v920 = vsel %vm511, %v919, 0.0
        %921 = vadd.xlane.f32.xlu0 %v920
        %v922 = vpop.xlane.xlu0 %921
        %v923 = vrcp.pop %v922
        %v924 = vmul.f32 %v919, %v923
        %v925 = vpack.c.bf16 %v924, %v924
        %926 = vrot.lane.b32.xlu0 %v502, 40
        %v927 = vpop.permute.xlu0 %926
        %v929 = vsel %vm511, %v925, 0
        %v932 = vsel %vm576, %v927, 0
        %934 = vmatprep.subr.bf16.mxu0 0
        %935 = vmatpush1.bf16.msra.mxu0 0
        %936 = vmatprep.subr.bf16.mxu0 0
        %937 = vmatpush1.bf16.msra.mxu0 0
        %938 = vmatprep.subr.bf16.mxu0 0
        %939 = vmatpush1.bf16.msra.mxu0 0
        %940 = vmatprep.subr.bf16.mxu0 0
        %941 = vmatpush1.bf16.msra.mxu0 0
        %942 = vmatprep.subr.bf16.mxu0 0
        %943 = vmatpush1.bf16.msra.mxu0 0
        %944 = vmatprep.subr.bf16.mxu0 0
        %945 = vmatpush1.bf16.msra.mxu0 0
        %946 = vmatprep.subr.bf16.mxu0 0
        %947 = vmatpush1.bf16.msra.mxu0 0
        %948 = vmatprep.subr.bf16.mxu0 0
        %949 = vmatpush1.bf16.msra.mxu0 %v932
        %950 = vmatprep.subr.bf16.mxu0 0
        %951 = vmatpush2.bf16.msra.mxu0 0
        %952 = vmatprep.subr.bf16.mxu0 0
        %953 = vmatpush2.bf16.msra.mxu0 0
        %954 = vmatprep.subr.bf16.mxu0 0
        %955 = vmatpush2.bf16.msra.mxu0 0
        %956 = vmatprep.subr.bf16.mxu0 0
        %957 = vmatpush2.bf16.msra.mxu0 0
        %958 = vmatprep.subr.bf16.mxu0 0
        %959 = vmatpush2.bf16.msra.mxu0 0
        %960 = vmatprep.subr.bf16.mxu0 0
        %961 = vmatpush2.bf16.msra.mxu0 0
        %962 = vmatprep.subr.bf16.mxu0 0
        %963 = vmatpush2.bf16.msra.mxu0 0
        %964 = vmatprep.subr.bf16.mxu0 0
        %965 = vmatpush2.bf16.msra.mxu0 0
        %966 = vmatprep.mubr.bf16.mxu0 0
        %967 = vmatmul.mubr.bf16.gmra.mxu0 %v929
        %v968 = vpop.f32.mrf.mxu0
        %v969 = vadd.f32 0.0, %v968
        %v970 = vpop.f32.mrf.mxu0
        %v971 = vpop.f32.mrf.mxu0
        %v972 = vpop.f32.mrf.mxu0
        %973 = vdwg.mxu0
        %v974 = vpack.c.bf16 %v969, %v969
        %v976 = vunpack.c.l.b16 %v974
        %v977 = vpack.c.b16 %v976, %v976
        %978 = vrot.lane.b32.xlu0 %v977, 24
        %v979 = vpop.permute.xlu0 %978
        %vm981 = vcmask 257216
        %982 = vst.msk [vmem:[#allocation2] sm:$0xf] %vm981, %v979
        %v983 = vld [vmem:[#allocation2] sm:$0xf]
        %v984 = vld [vmem:[%s4] sm:$0xf]
        %v985 = vld [vmem:[%s4 + $0x4] sm:$0xf]
        %v986 = vld [vmem:[%s4 + $0x8] sm:$0xf]
        %v987 = vld [vmem:[%s4 + $0xc] sm:$0xf]
        %v992 = vunpack.c.l.b16 %v984
        %v993 = vunpack.c.l.b16 %v985
        %v994 = vunpack.c.l.b16 %v986
        %v995 = vunpack.c.l.b16 %v987
        %v996 = vpack.c.b16 %v993, %v992
        %v997 = vpack.c.b16 %v995, %v994
        %v1001 = vsel %vm413, %v983, 0
        %1003 = vmatprep.subr.bf16.mxu0 0
        %1004 = vmatpush1.bf16.msra.mxu0 0
        %1005 = vmatprep.subr.bf16.mxu0 0
        %1006 = vmatpush1.bf16.msra.mxu0 0
        %1007 = vmatprep.subr.bf16.mxu0 0
        %1008 = vmatpush1.bf16.msra.mxu0 0
        %1009 = vmatprep.subr.bf16.mxu0 0
        %1010 = vmatpush1.bf16.msra.mxu0 0
        %1011 = vmatprep.subr.bf16.mxu0 0
        %1012 = vmatpush1.bf16.msra.mxu0 0
        %1013 = vmatprep.subr.bf16.mxu0 0
        %1014 = vmatpush1.bf16.msra.mxu0 0
        %1015 = vmatprep.subr.bf16.mxu0 0
        %1016 = vmatpush1.bf16.msra.mxu0 %v997
        %1017 = vmatprep.subr.bf16.mxu0 0
        %1018 = vmatpush1.bf16.msra.mxu0 %v996
        %1019 = vmatprep.subr.bf16.mxu0 0
        %1020 = vmatpush2.bf16.msra.mxu0 0
        %1021 = vmatprep.subr.bf16.mxu0 0
        %1022 = vmatpush2.bf16.msra.mxu0 0
        %1023 = vmatprep.subr.bf16.mxu0 0
        %1024 = vmatpush2.bf16.msra.mxu0 0
        %1025 = vmatprep.subr.bf16.mxu0 0
        %1026 = vmatpush2.bf16.msra.mxu0 0
        %1027 = vmatprep.subr.bf16.mxu0 0
        %1028 = vmatpush2.bf16.msra.mxu0 0
        %1029 = vmatprep.subr.bf16.mxu0 0
        %1030 = vmatpush2.bf16.msra.mxu0 0
        %1031 = vmatprep.subr.bf16.mxu0 0
        %1032 = vmatpush2.bf16.msra.mxu0 0
        %1033 = vmatprep.subr.bf16.mxu0 0
        %1034 = vmatpush2.bf16.msra.mxu0 0
        %1035 = vmatprep.mubr.bf16.mxu0 0
        %1036 = vmatmul.mubr.bf16.gmra.mxu0 %v1001
        %v1037 = vpop.f32.mrf.mxu0
        %v1038 = vadd.f32 0.0, %v1037
        %v1039 = vpop.f32.mrf.mxu0
        %v1040 = vpop.f32.mrf.mxu0
        %v1041 = vpop.f32.mrf.mxu0
        %1042 = vdwg.mxu0
        %v1043 = vadd.f32 %v410, %v1038
        %v1044 = vld [vmem:[%s5] sm:$0x1]
        %v1046 = vlaneseq
        %v1047 = vshrl.u32 %v1046, 7
        %v1048 = vsub.s32 0, %v1047
        %v1049 = vrot.slane %v1044, %v1048
        %v1051 = vadd.f32 %v1043, %v1049
        %v1052 = vld [vmem:[%s6] sm:$0x1]
        %v1053 = vld [vmem:[%s7] sm:$0x1]
        %v1054 = vsel %vm413, %v1051, 0.0
        %1055 = vadd.xlane.f32.xlu0 %v1054
        %v1056 = vpop.xlane.xlu0 %1055
        %v1057 = vmul.f32 %v1056, %v417
        %v1058 = vsub.f32 %v1051, %v1057
        %v1059 = vmul.f32 %v1058, %v1058
        %v1060 = vsel %vm413, %v1059, 0.0
        %1061 = vadd.xlane.f32.xlu0 %v1060
        %v1062 = vpop.xlane.xlu0 %1061
        %v1063 = vmul.f32 %v1062, %v417
        %v1064 = vadd.f32 %v1063, 1e-05
        %v1065 = vrsqrt.pop %v1064
        %v1066 = vmul.f32 %v1058, %v1065
        %v1068 = vlaneseq
        %v1069 = vshrl.u32 %v1068, 7
        %v1070 = vsub.s32 0, %v1069
        %v1071 = vrot.slane %v1052, %v1070
        %v1073 = vmul.f32 %v1066, %v1071
        %v1075 = vlaneseq
        %v1076 = vshrl.u32 %v1075, 7
        %v1077 = vsub.s32 0, %v1076
        %v1078 = vrot.slane %v1053, %v1077
        %v1080 = vadd.f32 %v1073, %v1078
        %v1081 = vpack.c.bf16 %v1080, %v1080
        %v1082 = vld [vmem:[%s8] sm:$0xf]
        %v1083 = vld [vmem:[%s8 + $0x4] sm:$0xf]
        %v1084 = vld [vmem:[%s8 + $0x8] sm:$0xf]
        %v1085 = vld [vmem:[%s8 + $0xc] sm:$0xf]
        %v1086 = vld [vmem:[%s9] sm:$0x1]
        %v1088 = vlaneseq
        %v1089 = vshrl.u32 %v1088, 7
        %v1090 = vsub.s32 0, %v1089
        %v1091 = vrot.slane %v1086, %v1090
        %v1097 = vunpack.c.l.b16 %v1082
        %v1098 = vunpack.c.l.b16 %v1083
        %v1099 = vunpack.c.l.b16 %v1084
        %v1100 = vunpack.c.l.b16 %v1085
        %v1101 = vpack.c.b16 %v1098, %v1097
        %v1102 = vpack.c.b16 %v1100, %v1099
        %v1106 = vsel %vm413, %v1081, 0
        %1108 = vmatprep.subr.bf16.mxu0 0
        %1109 = vmatpush1.bf16.msra.mxu0 0
        %1110 = vmatprep.subr.bf16.mxu0 0
        %1111 = vmatpush1.bf16.msra.mxu0 0
        %1112 = vmatprep.subr.bf16.mxu0 0
        %1113 = vmatpush1.bf16.msra.mxu0 0
        %1114 = vmatprep.subr.bf16.mxu0 0
        %1115 = vmatpush1.bf16.msra.mxu0 0
        %1116 = vmatprep.subr.bf16.mxu0 0
        %1117 = vmatpush1.bf16.msra.mxu0 0
        %1118 = vmatprep.subr.bf16.mxu0 0
        %1119 = vmatpush1.bf16.msra.mxu0 0
        %1120 = vmatprep.subr.bf16.mxu0 0
        %1121 = vmatpush1.bf16.msra.mxu0 %v1102
        %1122 = vmatprep.subr.bf16.mxu0 0
        %1123 = vmatpush1.bf16.msra.mxu0 %v1101
        %1124 = vmatprep.subr.bf16.mxu0 0
        %1125 = vmatpush2.bf16.msra.mxu0 0
        %1126 = vmatprep.subr.bf16.mxu0 0
        %1127 = vmatpush2.bf16.msra.mxu0 0
        %1128 = vmatprep.subr.bf16.mxu0 0
        %1129 = vmatpush2.bf16.msra.mxu0 0
        %1130 = vmatprep.subr.bf16.mxu0 0
        %1131 = vmatpush2.bf16.msra.mxu0 0
        %1132 = vmatprep.subr.bf16.mxu0 0
        %1133 = vmatpush2.bf16.msra.mxu0 0
        %1134 = vmatprep.subr.bf16.mxu0 0
        %1135 = vmatpush2.bf16.msra.mxu0 0
        %1136 = vmatprep.subr.bf16.mxu0 0
        %1137 = vmatpush2.bf16.msra.mxu0 0
        %1138 = vmatprep.subr.bf16.mxu0 0
        %1139 = vmatpush2.bf16.msra.mxu0 0
        %1140 = vmatprep.mubr.bf16.mxu0 0
        %1141 = vmatmul.mubr.bf16.gmra.mxu0 %v1106
        %v1142 = vpop.f32.mrf.mxu0
        %v1143 = vadd.f32 %v1091, %v1142
        %v1144 = vpop.f32.mrf.mxu0
        %v1145 = vpop.f32.mrf.mxu0
        %v1146 = vpop.f32.mrf.mxu0
        %1147 = vdwg.mxu0
        %v1148 = vmax.f32 %v1143, 0.0
        %v1149 = vpack.c.bf16 %v1148, %v1148
        %v1150 = vld [vmem:[%s10] sm:$0xf]
        %v1151 = vld [vmem:[%s10 + $0x4] sm:$0xf]
        %v1152 = vld [vmem:[%s10 + $0x8] sm:$0xf]
        %v1153 = vld [vmem:[%s10 + $0xc] sm:$0xf]
        %v1154 = vld [vmem:[%s10 + $0x10] sm:$0xf]
        %v1155 = vld [vmem:[%s10 + $0x14] sm:$0xf]
        %v1156 = vld [vmem:[%s10 + $0x18] sm:$0xf]
        %v1157 = vld [vmem:[%s10 + $0x1c] sm:$0xf]
        %v1158 = vld [vmem:[%s10 + $0x20] sm:$0xf]
        %v1159 = vld [vmem:[%s10 + $0x24] sm:$0xf]
        %v1160 = vld [vmem:[%s10 + $0x28] sm:$0xf]
        %v1161 = vld [vmem:[%s10 + $0x2c] sm:$0xf]
        %v1162 = vld [vmem:[%s10 + $0x30] sm:$0xf]
        %v1163 = vld [vmem:[%s10 + $0x34] sm:$0xf]
        %v1164 = vld [vmem:[%s10 + $0x38] sm:$0xf]
        %v1165 = vld [vmem:[%s10 + $0x3c] sm:$0xf]
        %v1166 = vld [vmem:[%s11] sm:$0x1]
        %v1168 = vlaneseq
        %v1169 = vshrl.u32 %v1168, 7
        %v1170 = vsub.s32 0, %v1169
        %v1171 = vrot.slane %v1166, %v1170
        %v1189 = vunpack.c.l.b16 %v1150
        %v1190 = vunpack.c.l.b16 %v1151
        %v1191 = vunpack.c.l.b16 %v1152
        %v1192 = vunpack.c.l.b16 %v1153
        %v1193 = vunpack.c.l.b16 %v1154
        %v1194 = vunpack.c.l.b16 %v1155
        %v1195 = vunpack.c.l.b16 %v1156
        %v1196 = vunpack.c.l.b16 %v1157
        %v1197 = vunpack.c.l.b16 %v1158
        %v1198 = vunpack.c.l.b16 %v1159
        %v1199 = vunpack.c.l.b16 %v1160
        %v1200 = vunpack.c.l.b16 %v1161
        %v1201 = vunpack.c.l.b16 %v1162
        %v1202 = vunpack.c.l.b16 %v1163
        %v1203 = vunpack.c.l.b16 %v1164
        %v1204 = vunpack.c.l.b16 %v1165
        %v1205 = vpack.c.b16 %v1190, %v1189
        %v1206 = vpack.c.b16 %v1192, %v1191
        %v1207 = vpack.c.b16 %v1194, %v1193
        %v1208 = vpack.c.b16 %v1196, %v1195
        %v1209 = vpack.c.b16 %v1198, %v1197
        %v1210 = vpack.c.b16 %v1200, %v1199
        %v1211 = vpack.c.b16 %v1202, %v1201
        %v1212 = vpack.c.b16 %v1204, %v1203
        %1221 = vmatprep.subr.bf16.mxu0 0
        %1222 = vmatpush1.bf16.msra.mxu0 %v1212
        %1223 = vmatprep.subr.bf16.mxu0 0
        %1224 = vmatpush1.bf16.msra.mxu0 %v1211
        %1225 = vmatprep.subr.bf16.mxu0 0
        %1226 = vmatpush1.bf16.msra.mxu0 %v1210
        %1227 = vmatprep.subr.bf16.mxu0 0
        %1228 = vmatpush1.bf16.msra.mxu0 %v1209
        %1229 = vmatprep.subr.bf16.mxu0 0
        %1230 = vmatpush1.bf16.msra.mxu0 %v1208
        %1231 = vmatprep.subr.bf16.mxu0 0
        %1232 = vmatpush1.bf16.msra.mxu0 %v1207
        %1233 = vmatprep.subr.bf16.mxu0 0
        %1234 = vmatpush1.bf16.msra.mxu0 %v1206
        %1235 = vmatprep.subr.bf16.mxu0 0
        %1236 = vmatpush1.bf16.msra.mxu0 %v1205
        %1237 = vmatprep.subr.bf16.mxu0 0
        %1238 = vmatpush2.bf16.msra.mxu0 0
        %1239 = vmatprep.subr.bf16.mxu0 0
        %1240 = vmatpush2.bf16.msra.mxu0 0
        %1241 = vmatprep.subr.bf16.mxu0 0
        %1242 = vmatpush2.bf16.msra.mxu0 0
        %1243 = vmatprep.subr.bf16.mxu0 0
        %1244 = vmatpush2.bf16.msra.mxu0 0
        %1245 = vmatprep.subr.bf16.mxu0 0
        %1246 = vmatpush2.bf16.msra.mxu0 0
        %1247 = vmatprep.subr.bf16.mxu0 0
        %1248 = vmatpush2.bf16.msra.mxu0 0
        %1249 = vmatprep.subr.bf16.mxu0 0
        %1250 = vmatpush2.bf16.msra.mxu0 0
        %1251 = vmatprep.subr.bf16.mxu0 0
        %1252 = vmatpush2.bf16.msra.mxu0 0
        %1253 = vmatprep.mubr.bf16.mxu0 0
        %1254 = vmatmul.mubr.bf16.gmra.mxu0 %v1149
        %v1255 = vpop.f32.mrf.mxu0
        %v1256 = vadd.f32 %v1171, %v1255
        %v1257 = vpop.f32.mrf.mxu0
        %v1258 = vpop.f32.mrf.mxu0
        %v1259 = vpop.f32.mrf.mxu0
        %1260 = vdwg.mxu0
        %v1261 = vadd.f32 %v1051, %v1256
        %1262 = vst.msk [vmem:[%s404] sm:$0xff] %vm413, %v1261
        %s1263 = sand.u32 %s291, 1
        %s1264 = scalar_lea.sflag [#allocation4], %s1263
        %s1265 = sand.u32 %s291, 1
        %s1266 = smul.addr %s1265, 8
        %s1267 = scalar_lea.vmem [#allocation3], %s1266
        // Predicated region
        $region69: #{tpu_custom_call.1} parent=67 // pred_check
          %p1268 = pneg %p301
        $region70: #{tpu_custom_call.1} parent=67 // pred_check_branch
          %1270 = sbr.rel (%p1268) target = $region72
        $region71: #{tpu_custom_call.1} parent=67 // pred_region
          %s1272 = ssub.s32 128, 128
          %1273 = vsyncadd %s1264, %s1272
          %s1274 = smul.addr %s26, 128
          %s1275 = scalar_lea.hbm %s12, %s1274
          %s1277 = sshll.u32 %s1267, 4
          %s1278 = int_to_ptr.vmem [resolvable:$true] %s1277
          %1280 = dma.vmem_to_hbm [thread:$0]  %s1278, 128, %s1275, %s1264
        $region72: #{tpu_custom_call.1} parent=67 // pred_fallthru
          _
      $region68: #{tpu_custom_call.1} parent=5 // pred_fallthru
        _
      %p1281 = scmp.le.s32.totalorder 2, %s21
      // Predicated region
      $region73: #{tpu_custom_call.1} parent=5 // pred_check
        %p1282 = pneg %p1281
      $region74: #{tpu_custom_call.1} parent=5 // pred_check_branch
        %1284 = sbr.rel (%p1282) target = $region76
      $region75: #{tpu_custom_call.1} parent=5 // pred_region
        %s1285 = ssub.s32 %s21, 2
        // Predicated region
        $region77: #{tpu_custom_call.1} parent=75 // pred_check
          %p1286 = pneg %p307
        $region78: #{tpu_custom_call.1} parent=75 // pred_check_branch
          %1288 = sbr.rel (%p1286) target = $region80
        $region79: #{tpu_custom_call.1} parent=75 // pred_region
          %s1289 = sand.u32 %s292, 1
          %s1290 = scalar_lea.sflag [#allocation4], %s1289
          %s1291 = sand.u32 %s292, 1
          %s1292 = smul.addr %s1291, 8
          %s1293 = scalar_lea.vmem [#allocation3], %s1292
          %1294 = dma.done %s1290, 128
        $region80: #{tpu_custom_call.1} parent=75 // pred_fallthru
          _
      $region76: #{tpu_custom_call.1} parent=5 // pred_fallthru
        _
    $region6: #{tpu_custom_call.1} parent=1 // loop_footer
      %s25 = sadd.s32 1, %s21
    $region7: #{tpu_custom_call.1} parent=1 // loop_footer_branch
      %20 = sbr.rel target = $region3
    $region8: #{tpu_custom_call.1} parent=1 // loop_exit
      _
    %1295 = vsyncpa [#allocation4], 1
    %s1296 = scalar_lea.sflag [#allocation4], 1
    %1297 = vsyncpa %s1296, 1

</llo_original>
